<compile_context>
chip_gen: v7x
topology: tpu7x:2x2x1
jax: 0.10.0
libtpu: 0.0.40
codegen_flags: <defaults>
</compile_context>

<pallas_src>
import jax
import jax.numpy as jnp
from jax.experimental import pallas as pl
from jax.experimental.pallas import tpu as pltpu


def _round_up(a, b):
    return (a + b - 1) // b * b


# ----------------------------- Pallas kernel -------------------------------

def _make_kernel(dim_1):
    def kernel(x_ref, obs_ref,
               t1w1a, t1w1b, t1b1, t1w2, t1b2, t1w3, t1b3,
               t2w1a, t2w1b, t2b1, t2w2, t2b2, t2w3, t2b3,
               z_ref):
        x = x_ref[...]                      # (TM, dim)   compact, f32
        lower = x[:, :dim_1]                # (TM, dim_1)
        upper = x[:, dim_1:]                # (TM, dim_2)
        obs = obs_ref[...]                  # (1, obser_dim)  per-batch block

        def fcnn(xa, wa, xb, wb, b1, w2, b2, w3, b3):
            # FCNN forward: Linear -> Tanh -> Linear -> Tanh -> Linear.
            # First Linear acts on cat(xa, xb); split-weight form avoids
            # building any lane-padded concatenated activation.
            h = jnp.tanh(
                jnp.dot(xa, wa[...], preferred_element_type=jnp.float32)
                + jnp.dot(xb, wb[...], preferred_element_type=jnp.float32)
                + b1[...])
            h = jnp.tanh(jnp.dot(h, w2[...], preferred_element_type=jnp.float32)
                         + b2[...])
            return jnp.dot(h, w3[...], preferred_element_type=jnp.float32) + b3[...]

        upper_new = fcnn(lower, t1w1a, obs, t1w1b,
                         t1b1, t1w2, t1b2, t1w3, t1b3) + upper   # (TM, dim_2)
        lower_new = fcnn(upper_new, t2w1a, obs, t2w1b,
                         t2b1, t2w2, t2b2, t2w3, t2b3) + lower   # (TM, dim_1)

        # z = concat([lower_new, upper_new], -1) via two sub-lane stores.
        z_ref[:, :dim_1] = lower_new
        z_ref[:, dim_1:] = upper_new
    return kernel


# --------------------------- parameter handling ----------------------------

def init_fcnn_params(key, in_dim, out_dim, hidden_dim, std=0.1):
    """FCNN: Linear(in,h) -> Tanh -> Linear(h,h) -> Tanh -> Linear(h,out).
    Deterministic synthetic init; weights stored (in, out) so kernel does x@W+b."""
    ks = jax.random.split(key, 6)
    w1 = std * jax.random.normal(ks[0], (in_dim, hidden_dim), jnp.float32)
    b1 = std * jax.random.normal(ks[1], (hidden_dim,), jnp.float32)
    w2 = std * jax.random.normal(ks[2], (hidden_dim, hidden_dim), jnp.float32)
    b2 = std * jax.random.normal(ks[3], (hidden_dim,), jnp.float32)
    w3 = std * jax.random.normal(ks[4], (hidden_dim, out_dim), jnp.float32)
    b3 = std * jax.random.normal(ks[5], (out_dim,), jnp.float32)
    return (w1, b1, w2, b2, w3, b3)


def _split_first_layer(params, k_a):
    """Split W1 into rows multiplying the state slice vs the observation slice;
    reshape biases to (1, H) for clean lane-axis broadcast inside the kernel."""
    w1, b1, w2, b2, w3, b3 = params
    return (w1[:k_a, :], w1[k_a:, :], b1.reshape(1, -1),
            w2, b2.reshape(1, -1), w3, b3.reshape(1, -1))


# ------------------------------- wrapper ------------------------------------

def realnvp_cond_t_forward(x, obser, time, t1_params, t2_params,
                           dim, obser_dim, tm=256):
    B, N, D = x.shape
    assert D == dim and dim >= 2 and obser_dim >= 1
    dim_1 = dim - dim // 2

    xf = x.astype(jnp.float32)                                  # [B, N, dim] compact
    obs = obser[time].astype(jnp.float32).reshape(B, 1, obser_dim)

    # Row tile: big for real workloads, rounded down for toy N; multiple of 8.
    TM = min(tm, _round_up(N, 8))
    N_pad = _round_up(N, TM)
    if N_pad != N:
        xf = jnp.pad(xf, ((0, 0), (0, N_pad - N), (0, 0)))

    t1p = _split_first_layer(t1_params, dim_1)
    t2p = _split_first_layer(t2_params, dim - dim_1)

    row_spec = pl.BlockSpec((None, TM, dim), lambda b, i: (b, i, 0))
    obs_spec = pl.BlockSpec((None, 1, obser_dim), lambda b, i: (b, 0, 0))

    def const_spec(a):
        return pl.BlockSpec(a.shape, lambda b, i: (0, 0))       # all params are 2-D

    param_specs = [const_spec(a) for a in (*t1p, *t2p)]

    grid = (B, N_pad // TM)

    z_pad = pl.pallas_call(
        _make_kernel(dim_1),
        out_shape=jax.ShapeDtypeStruct((B, N_pad, dim), jnp.float32),
        grid=grid,
        in_specs=[row_spec, obs_spec] + param_specs,
        out_specs=row_spec,
        compiler_params=pltpu.CompilerParams(
            dimension_semantics=("parallel", "parallel")),
    )(xf, obs, *t1p, *t2p)

    z = z_pad if N_pad == N else z_pad[:, :N, :]
    log_det = jnp.zeros((B, N), jnp.float32)   # reference: zeros_like(sum(s2, -1))
    return z, log_det


# ------------------------------ pure-JAX ref --------------------------------

def _fcnn_ref(x, p):
    """FCNN.forward: Linear -> Tanh -> Linear -> Tanh -> Linear."""
    w1, b1, w2, b2, w3, b3 = p
    h = jnp.tanh(x @ w1 + b1)
    h = jnp.tanh(h @ w2 + b2)
    return h @ w3 + b3


def realnvp_cond_t_ref(x, obser, time, t1_params, t2_params, dim, obser_dim):
    B, N, D = x.shape
    dim_1 = dim - dim // 2
    xf = x.astype(jnp.float32)
    obs = jnp.broadcast_to(obser[time][:, None, :], (B, N, obser_dim)).astype(jnp.float32)
    lower, upper = xf[..., :dim_1], xf[..., dim_1:]
    t1_out = _fcnn_ref(jnp.concatenate([lower, obs], -1), t1_params)
    upper = t1_out + upper
    t2_out = _fcnn_ref(jnp.concatenate([upper, obs], -1), t2_params)
    lower = t2_out + lower
    z = jnp.concatenate([lower, upper], -1)
    return z, jnp.zeros((B, N), jnp.float32)


# --------------------------------- main --------------------------------------

if __name__ == "__main__":
    dim = 4
    obser_dim = 2
    hidden_dim = 32
    dim_1 = dim - dim // 2
    dim_2 = dim // 2
    B, N, T = 2, 8, 5
    time = 3

    key = jax.random.PRNGKey(0)
    kx, ko, k1, k2 = jax.random.split(key, 4)
    x = jax.random.normal(kx, (B, N, dim), jnp.float32)
    obser = jax.random.normal(ko, (T, B, obser_dim), jnp.float32)

    t1_params = init_fcnn_params(k1, dim_1 + obser_dim, dim_2, hidden_dim)
    t2_params = init_fcnn_params(k2, dim_2 + obser_dim, dim_1, hidden_dim)
    # TODO(synk): x_mean/x_std and the s1/s2 FCNNs of the module are dead code in
    # the reference forward (outputs unused) — not instantiated.

    z, log_det = realnvp_cond_t_forward(x, obser, time, t1_params, t2_params,
                                        dim, obser_dim)
    z = jax.block_until_ready(z)
    log_det = jax.block_until_ready(log_det)

    z_ref, log_det_ref = realnvp_cond_t_ref(x, obser, time, t1_params, t2_params,
                                            dim, obser_dim)
    assert z.shape == (B, N, dim) and log_det.shape == (B, N)
    assert jnp.allclose(z, z_ref, rtol=1e-5, atol=1e-5), "z mismatch vs reference"
    assert jnp.allclose(log_det, log_det_ref), "log_det mismatch vs reference"

    print("KERNEL_OK")
</pallas_src>

<mosaic_0001>
module attributes {stable_mosaic.version = 11 : i64} {
  func.func @kernel(%arg0: i32, %arg1: i32, %arg2: memref<1x8x4xf32, #tpu.memory_space<vmem>>, %arg3: memref<1x1x2xf32, #tpu.memory_space<vmem>>, %arg4: memref<2x32xf32, #tpu.memory_space<vmem>>, %arg5: memref<2x32xf32, #tpu.memory_space<vmem>>, %arg6: memref<1x32xf32, #tpu.memory_space<vmem>>, %arg7: memref<32x32xf32, #tpu.memory_space<vmem>>, %arg8: memref<1x32xf32, #tpu.memory_space<vmem>>, %arg9: memref<32x2xf32, #tpu.memory_space<vmem>>, %arg10: memref<1x2xf32, #tpu.memory_space<vmem>>, %arg11: memref<2x32xf32, #tpu.memory_space<vmem>>, %arg12: memref<2x32xf32, #tpu.memory_space<vmem>>, %arg13: memref<1x32xf32, #tpu.memory_space<vmem>>, %arg14: memref<32x32xf32, #tpu.memory_space<vmem>>, %arg15: memref<1x32xf32, #tpu.memory_space<vmem>>, %arg16: memref<32x2xf32, #tpu.memory_space<vmem>>, %arg17: memref<1x2xf32, #tpu.memory_space<vmem>>, %arg18: memref<1x8x4xf32, #tpu.memory_space<vmem>>) attributes {dimension_semantics = [#tpu.dimension_semantics<parallel>, #tpu.dimension_semantics<parallel>], iteration_bounds = array<i64: 2, 1>, scalar_prefetch = 0 : i64, scratch_operands = 0 : i64, tpu.core_type = #tpu.core_type<tc>, window_params = [{transform_indices = @transform_0, window_bounds = array<i64: 1, 8, 4>}, {transform_indices = @transform_1, window_bounds = array<i64: 1, 1, 2>}, {pipeline_mode = #tpu.pipeline_mode<synchronous>, transform_indices = @transform_2, window_bounds = array<i64: 2, 32>}, {pipeline_mode = #tpu.pipeline_mode<synchronous>, transform_indices = @transform_3, window_bounds = array<i64: 2, 32>}, {pipeline_mode = #tpu.pipeline_mode<synchronous>, transform_indices = @transform_4, window_bounds = array<i64: 1, 32>}, {pipeline_mode = #tpu.pipeline_mode<synchronous>, transform_indices = @transform_5, window_bounds = array<i64: 32, 32>}, {pipeline_mode = #tpu.pipeline_mode<synchronous>, transform_indices = @transform_6, window_bounds = array<i64: 1, 32>}, {pipeline_mode = #tpu.pipeline_mode<synchronous>, transform_indices = @transform_7, window_bounds = array<i64: 32, 2>}, {pipeline_mode = #tpu.pipeline_mode<synchronous>, transform_indices = @transform_8, window_bounds = array<i64: 1, 2>}, {pipeline_mode = #tpu.pipeline_mode<synchronous>, transform_indices = @transform_9, window_bounds = array<i64: 2, 32>}, {pipeline_mode = #tpu.pipeline_mode<synchronous>, transform_indices = @transform_10, window_bounds = array<i64: 2, 32>}, {pipeline_mode = #tpu.pipeline_mode<synchronous>, transform_indices = @transform_11, window_bounds = array<i64: 1, 32>}, {pipeline_mode = #tpu.pipeline_mode<synchronous>, transform_indices = @transform_12, window_bounds = array<i64: 32, 32>}, {pipeline_mode = #tpu.pipeline_mode<synchronous>, transform_indices = @transform_13, window_bounds = array<i64: 1, 32>}, {pipeline_mode = #tpu.pipeline_mode<synchronous>, transform_indices = @transform_14, window_bounds = array<i64: 32, 2>}, {pipeline_mode = #tpu.pipeline_mode<synchronous>, transform_indices = @transform_15, window_bounds = array<i64: 1, 2>}, {transform_indices = @transform_16, window_bounds = array<i64: 1, 8, 4>}]} {
    %c0 = arith.constant 0 : index
    %c0_0 = arith.constant 0 : index
    %c0_1 = arith.constant 0 : index
    %0 = vector.load %arg2[%c0, %c0_0, %c0_1] : memref<1x8x4xf32, #tpu.memory_space<vmem>>, vector<1x8x4xf32>
    %1 = vector.shape_cast %0 : vector<1x8x4xf32> to vector<8x4xf32>
    %2 = vector.extract_strided_slice %1 {offsets = [0, 0], sizes = [8, 2], strides = [1, 1]} : vector<8x4xf32> to vector<8x2xf32>
    %3 = vector.extract_strided_slice %1 {offsets = [0, 2], sizes = [8, 2], strides = [1, 1]} : vector<8x4xf32> to vector<8x2xf32>
    %c0_2 = arith.constant 0 : index
    %c0_3 = arith.constant 0 : index
    %c0_4 = arith.constant 0 : index
    %4 = vector.load %arg3[%c0_2, %c0_3, %c0_4] : memref<1x1x2xf32, #tpu.memory_space<vmem>>, vector<1x1x2xf32>
    %5 = vector.shape_cast %4 : vector<1x1x2xf32> to vector<1x2xf32>
    %c0_5 = arith.constant 0 : index
    %c0_6 = arith.constant 0 : index
    %6 = vector.load %arg4[%c0_5, %c0_6] : memref<2x32xf32, #tpu.memory_space<vmem>>, vector<2x32xf32>
    %cst = arith.constant dense<0.000000e+00> : vector<8x32xf32>
    %7 = tpu.matmul %2, %6, %cst {dimension_numbers = #tpu.dot_dimension_numbers<[1], [0], [0], [1], [0, 0, 1, 1], [], []>} : vector<8x2xf32>, vector<2x32xf32>, vector<8x32xf32> -> vector<8x32xf32>
    %c0_7 = arith.constant 0 : index
    %c0_8 = arith.constant 0 : index
    %8 = vector.load %arg5[%c0_7, %c0_8] : memref<2x32xf32, #tpu.memory_space<vmem>>, vector<2x32xf32>
    %cst_9 = arith.constant dense<0.000000e+00> : vector<1x32xf32>
    %9 = tpu.matmul %5, %8, %cst_9 {dimension_numbers = #tpu.dot_dimension_numbers<[1], [0], [0], [1], [0, 0, 1, 1], [], []>} : vector<1x2xf32>, vector<2x32xf32>, vector<1x32xf32> -> vector<1x32xf32>
    %10 = vector.broadcast %9 : vector<1x32xf32> to vector<8x32xf32>
    %11 = arith.addf %7, %10 : vector<8x32xf32>
    %c0_10 = arith.constant 0 : index
    %c0_11 = arith.constant 0 : index
    %12 = vector.load %arg6[%c0_10, %c0_11] : memref<1x32xf32, #tpu.memory_space<vmem>>, vector<1x32xf32>
    %13 = vector.broadcast %12 : vector<1x32xf32> to vector<8x32xf32>
    %14 = arith.addf %11, %13 : vector<8x32xf32>
    %15 = math.tanh %14 : vector<8x32xf32>
    %c0_12 = arith.constant 0 : index
    %c0_13 = arith.constant 0 : index
    %16 = vector.load %arg7[%c0_12, %c0_13] : memref<32x32xf32, #tpu.memory_space<vmem>>, vector<32x32xf32>
    %cst_14 = arith.constant dense<0.000000e+00> : vector<8x32xf32>
    %17 = tpu.matmul %15, %16, %cst_14 {dimension_numbers = #tpu.dot_dimension_numbers<[1], [0], [0], [1], [0, 0, 1, 1], [], []>} : vector<8x32xf32>, vector<32x32xf32>, vector<8x32xf32> -> vector<8x32xf32>
    %c0_15 = arith.constant 0 : index
    %c0_16 = arith.constant 0 : index
    %18 = vector.load %arg8[%c0_15, %c0_16] : memref<1x32xf32, #tpu.memory_space<vmem>>, vector<1x32xf32>
    %19 = vector.broadcast %18 : vector<1x32xf32> to vector<8x32xf32>
    %20 = arith.addf %17, %19 : vector<8x32xf32>
    %21 = math.tanh %20 : vector<8x32xf32>
    %c0_17 = arith.constant 0 : index
    %c0_18 = arith.constant 0 : index
    %22 = vector.load %arg9[%c0_17, %c0_18] : memref<32x2xf32, #tpu.memory_space<vmem>>, vector<32x2xf32>
    %cst_19 = arith.constant dense<0.000000e+00> : vector<8x2xf32>
    %23 = tpu.matmul %21, %22, %cst_19 {dimension_numbers = #tpu.dot_dimension_numbers<[1], [0], [0], [1], [0, 0, 1, 1], [], []>} : vector<8x32xf32>, vector<32x2xf32>, vector<8x2xf32> -> vector<8x2xf32>
    %c0_20 = arith.constant 0 : index
    %c0_21 = arith.constant 0 : index
    %24 = vector.load %arg10[%c0_20, %c0_21] : memref<1x2xf32, #tpu.memory_space<vmem>>, vector<1x2xf32>
    %25 = vector.broadcast %24 : vector<1x2xf32> to vector<8x2xf32>
    %26 = arith.addf %23, %25 : vector<8x2xf32>
    %27 = arith.addf %26, %3 : vector<8x2xf32>
    %c0_22 = arith.constant 0 : index
    %c0_23 = arith.constant 0 : index
    %28 = vector.load %arg11[%c0_22, %c0_23] : memref<2x32xf32, #tpu.memory_space<vmem>>, vector<2x32xf32>
    %cst_24 = arith.constant dense<0.000000e+00> : vector<8x32xf32>
    %29 = tpu.matmul %27, %28, %cst_24 {dimension_numbers = #tpu.dot_dimension_numbers<[1], [0], [0], [1], [0, 0, 1, 1], [], []>} : vector<8x2xf32>, vector<2x32xf32>, vector<8x32xf32> -> vector<8x32xf32>
    %c0_25 = arith.constant 0 : index
    %c0_26 = arith.constant 0 : index
    %30 = vector.load %arg12[%c0_25, %c0_26] : memref<2x32xf32, #tpu.memory_space<vmem>>, vector<2x32xf32>
    %cst_27 = arith.constant dense<0.000000e+00> : vector<1x32xf32>
    %31 = tpu.matmul %5, %30, %cst_27 {dimension_numbers = #tpu.dot_dimension_numbers<[1], [0], [0], [1], [0, 0, 1, 1], [], []>} : vector<1x2xf32>, vector<2x32xf32>, vector<1x32xf32> -> vector<1x32xf32>
    %32 = vector.broadcast %31 : vector<1x32xf32> to vector<8x32xf32>
    %33 = arith.addf %29, %32 : vector<8x32xf32>
    %c0_28 = arith.constant 0 : index
    %c0_29 = arith.constant 0 : index
    %34 = vector.load %arg13[%c0_28, %c0_29] : memref<1x32xf32, #tpu.memory_space<vmem>>, vector<1x32xf32>
    %35 = vector.broadcast %34 : vector<1x32xf32> to vector<8x32xf32>
    %36 = arith.addf %33, %35 : vector<8x32xf32>
    %37 = math.tanh %36 : vector<8x32xf32>
    %c0_30 = arith.constant 0 : index
    %c0_31 = arith.constant 0 : index
    %38 = vector.load %arg14[%c0_30, %c0_31] : memref<32x32xf32, #tpu.memory_space<vmem>>, vector<32x32xf32>
    %cst_32 = arith.constant dense<0.000000e+00> : vector<8x32xf32>
    %39 = tpu.matmul %37, %38, %cst_32 {dimension_numbers = #tpu.dot_dimension_numbers<[1], [0], [0], [1], [0, 0, 1, 1], [], []>} : vector<8x32xf32>, vector<32x32xf32>, vector<8x32xf32> -> vector<8x32xf32>
    %c0_33 = arith.constant 0 : index
    %c0_34 = arith.constant 0 : index
    %40 = vector.load %arg15[%c0_33, %c0_34] : memref<1x32xf32, #tpu.memory_space<vmem>>, vector<1x32xf32>
    %41 = vector.broadcast %40 : vector<1x32xf32> to vector<8x32xf32>
    %42 = arith.addf %39, %41 : vector<8x32xf32>
    %43 = math.tanh %42 : vector<8x32xf32>
    %c0_35 = arith.constant 0 : index
    %c0_36 = arith.constant 0 : index
    %44 = vector.load %arg16[%c0_35, %c0_36] : memref<32x2xf32, #tpu.memory_space<vmem>>, vector<32x2xf32>
    %cst_37 = arith.constant dense<0.000000e+00> : vector<8x2xf32>
    %45 = tpu.matmul %43, %44, %cst_37 {dimension_numbers = #tpu.dot_dimension_numbers<[1], [0], [0], [1], [0, 0, 1, 1], [], []>} : vector<8x32xf32>, vector<32x2xf32>, vector<8x2xf32> -> vector<8x2xf32>
    %c0_38 = arith.constant 0 : index
    %c0_39 = arith.constant 0 : index
    %46 = vector.load %arg17[%c0_38, %c0_39] : memref<1x2xf32, #tpu.memory_space<vmem>>, vector<1x2xf32>
    %47 = vector.broadcast %46 : vector<1x2xf32> to vector<8x2xf32>
    %48 = arith.addf %45, %47 : vector<8x2xf32>
    %49 = arith.addf %48, %2 : vector<8x2xf32>
    %c0_40 = arith.constant 0 : index
    %c0_41 = arith.constant 0 : index
    %c0_42 = arith.constant 0 : index
    %50 = vector.load %arg18[%c0_40, %c0_41, %c0_42] : memref<1x8x4xf32, #tpu.memory_space<vmem>>, vector<1x8x2xf32>
    %51 = vector.shape_cast %50 : vector<1x8x2xf32> to vector<8x2xf32>
    %52 = vector.shape_cast %49 : vector<8x2xf32> to vector<1x8x2xf32>
    tpu.vector_store %arg18[%c0_40, %c0_41, %c0_42], %52 {strides = array<i32>} : memref<1x8x4xf32, #tpu.memory_space<vmem>>, vector<1x8x2xf32>,
    %c0_43 = arith.constant 0 : index
    %c0_44 = arith.constant 0 : index
    %c2 = arith.constant 2 : index
    %53 = vector.load %arg18[%c0_43, %c0_44, %c2] : memref<1x8x4xf32, #tpu.memory_space<vmem>>, vector<1x8x2xf32>
    %54 = vector.shape_cast %53 : vector<1x8x2xf32> to vector<8x2xf32>
    %55 = vector.shape_cast %27 : vector<8x2xf32> to vector<1x8x2xf32>
    tpu.vector_store %arg18[%c0_43, %c0_44, %c2], %55 {strides = array<i32>} : memref<1x8x4xf32, #tpu.memory_space<vmem>>, vector<1x8x2xf32>,
    return
  }
  func.func @transform_0(%arg0: i32, %arg1: i32) -> (i32, i32, i32) {
    %c0_i32 = arith.constant 0 : i32
    %c0_i32_0 = arith.constant 0 : i32
    return %arg0, %arg1, %c0_i32 : i32, i32, i32
  }
  func.func @transform_1(%arg0: i32, %arg1: i32) -> (i32, i32, i32) {
    %c0_i32 = arith.constant 0 : i32
    %c0_i32_0 = arith.constant 0 : i32
    %c0_i32_1 = arith.constant 0 : i32
    return %arg0, %c0_i32, %c0_i32_0 : i32, i32, i32
  }
  func.func @transform_2(%arg0: i32, %arg1: i32) -> (i32, i32) {
    %c0_i32 = arith.constant 0 : i32
    %c0_i32_0 = arith.constant 0 : i32
    %c0_i32_1 = arith.constant 0 : i32
    return %c0_i32, %c0_i32_0 : i32, i32
  }
  func.func @transform_3(%arg0: i32, %arg1: i32) -> (i32, i32) {
    %c0_i32 = arith.constant 0 : i32
    %c0_i32_0 = arith.constant 0 : i32
    %c0_i32_1 = arith.constant 0 : i32
    return %c0_i32, %c0_i32_0 : i32, i32
  }
  func.func @transform_4(%arg0: i32, %arg1: i32) -> (i32, i32) {
    %c0_i32 = arith.constant 0 : i32
    %c0_i32_0 = arith.constant 0 : i32
    %c0_i32_1 = arith.constant 0 : i32
    return %c0_i32, %c0_i32_0 : i32, i32
  }
  func.func @transform_5(%arg0: i32, %arg1: i32) -> (i32, i32) {
    %c0_i32 = arith.constant 0 : i32
    %c0_i32_0 = arith.constant 0 : i32
    %c0_i32_1 = arith.constant 0 : i32
    return %c0_i32, %c0_i32_0 : i32, i32
  }
  func.func @transform_6(%arg0: i32, %arg1: i32) -> (i32, i32) {
    %c0_i32 = arith.constant 0 : i32
    %c0_i32_0 = arith.constant 0 : i32
    %c0_i32_1 = arith.constant 0 : i32
    return %c0_i32, %c0_i32_0 : i32, i32
  }
  func.func @transform_7(%arg0: i32, %arg1: i32) -> (i32, i32) {
    %c0_i32 = arith.constant 0 : i32
    %c0_i32_0 = arith.constant 0 : i32
    %c0_i32_1 = arith.constant 0 : i32
    return %c0_i32, %c0_i32_0 : i32, i32
  }
  func.func @transform_8(%arg0: i32, %arg1: i32) -> (i32, i32) {
    %c0_i32 = arith.constant 0 : i32
    %c0_i32_0 = arith.constant 0 : i32
    %c0_i32_1 = arith.constant 0 : i32
    return %c0_i32, %c0_i32_0 : i32, i32
  }
  func.func @transform_9(%arg0: i32, %arg1: i32) -> (i32, i32) {
    %c0_i32 = arith.constant 0 : i32
    %c0_i32_0 = arith.constant 0 : i32
    %c0_i32_1 = arith.constant 0 : i32
    return %c0_i32, %c0_i32_0 : i32, i32
  }
  func.func @transform_10(%arg0: i32, %arg1: i32) -> (i32, i32) {
    %c0_i32 = arith.constant 0 : i32
    %c0_i32_0 = arith.constant 0 : i32
    %c0_i32_1 = arith.constant 0 : i32
    return %c0_i32, %c0_i32_0 : i32, i32
  }
  func.func @transform_11(%arg0: i32, %arg1: i32) -> (i32, i32) {
    %c0_i32 = arith.constant 0 : i32
    %c0_i32_0 = arith.constant 0 : i32
    %c0_i32_1 = arith.constant 0 : i32
    return %c0_i32, %c0_i32_0 : i32, i32
  }
  func.func @transform_12(%arg0: i32, %arg1: i32) -> (i32, i32) {
    %c0_i32 = arith.constant 0 : i32
    %c0_i32_0 = arith.constant 0 : i32
    %c0_i32_1 = arith.constant 0 : i32
    return %c0_i32, %c0_i32_0 : i32, i32
  }
  func.func @transform_13(%arg0: i32, %arg1: i32) -> (i32, i32) {
    %c0_i32 = arith.constant 0 : i32
    %c0_i32_0 = arith.constant 0 : i32
    %c0_i32_1 = arith.constant 0 : i32
    return %c0_i32, %c0_i32_0 : i32, i32
  }
  func.func @transform_14(%arg0: i32, %arg1: i32) -> (i32, i32) {
    %c0_i32 = arith.constant 0 : i32
    %c0_i32_0 = arith.constant 0 : i32
    %c0_i32_1 = arith.constant 0 : i32
    return %c0_i32, %c0_i32_0 : i32, i32
  }
  func.func @transform_15(%arg0: i32, %arg1: i32) -> (i32, i32) {
    %c0_i32 = arith.constant 0 : i32
    %c0_i32_0 = arith.constant 0 : i32
    %c0_i32_1 = arith.constant 0 : i32
    return %c0_i32, %c0_i32_0 : i32, i32
  }
  func.func @transform_16(%arg0: i32, %arg1: i32) -> (i32, i32, i32) {
    %c0_i32 = arith.constant 0 : i32
    %c0_i32_0 = arith.constant 0 : i32
    return %arg0, %arg1, %c0_i32 : i32, i32, i32
  }
}

</mosaic_0001>

<llo_original>
// kernel: tpu_custom_call.1
$region0: #{tpu_custom_call.1}
  #allocation0 [shape = 'u32[]', space=smem, size = 0x4, offset = 0x4, fixed_abs, tag = 'smem constant byte address 0x4 - core index']
  #allocation1 [shape = 'u32[144,128]{1,0:T(1,128)}', space=vmem, size = 0x12000, scoped, tag = 'internal scratch']
  %s0 = inlined_call_operand.vmem [shape: f32[2,8,4], index: 0, kind: input, shape index: {}]
  %s1 = inlined_call_operand.vmem [shape: f32[2,1,2], index: 1, kind: input, shape index: {}]
  %s2 = inlined_call_operand.vmem [shape: f32[2,32], index: 2, kind: input, shape index: {}]
  %s3 = inlined_call_operand.vmem [shape: f32[2,32], index: 3, kind: input, shape index: {}]
  %s4 = inlined_call_operand.vmem [shape: f32[1,32], index: 4, kind: input, shape index: {}]
  %s5 = inlined_call_operand.vmem [shape: f32[32,32], index: 5, kind: input, shape index: {}]
  %s6 = inlined_call_operand.vmem [shape: f32[1,32], index: 6, kind: input, shape index: {}]
  %s7 = inlined_call_operand.vmem [shape: f32[32,2], index: 7, kind: input, shape index: {}]
  %s8 = inlined_call_operand.vmem [shape: f32[1,2], index: 8, kind: input, shape index: {}]
  %s9 = inlined_call_operand.vmem [shape: f32[2,32], index: 9, kind: input, shape index: {}]
  %s10 = inlined_call_operand.vmem [shape: f32[2,32], index: 10, kind: input, shape index: {}]
  %s11 = inlined_call_operand.vmem [shape: f32[1,32], index: 11, kind: input, shape index: {}]
  %s12 = inlined_call_operand.vmem [shape: f32[32,32], index: 12, kind: input, shape index: {}]
  %s13 = inlined_call_operand.vmem [shape: f32[1,32], index: 13, kind: input, shape index: {}]
  %s14 = inlined_call_operand.vmem [shape: f32[32,2], index: 14, kind: input, shape index: {}]
  %s15 = inlined_call_operand.vmem [shape: f32[1,2], index: 15, kind: input, shape index: {}]
  %s16 = inlined_call_operand.vmem [shape: f32[2,8,4], index: 16, kind: output, shape index: {}]
  %s17 = sld [smem:[#allocation0]]
  $region97: #{tpu_custom_call.1} parent=0
    _
  %s19 = ssub.s32 1, %s17
  %s20 = scalar_select 0, %s19, %s17
  loop: start=0, step=1, limit=4
  $region2: #{tpu_custom_call.1} parent=0 // loop_pre_header
    _
  $region3: #{tpu_custom_call.1} parent=0 // loop_header
    %s22 = sphi 0, %s26
    %p23 = scmp.ge.s32.totalorder %s22, 4
    %s29 = sphi 0, %s41
    %s30 = sphi 0, %s37
    %s31 = sphi 0, %s29
    %s32 = sphi 0, %s30
    %s33 = sphi 0, %s31
    %s34 = sphi 0, %s32
    %s46 = sphi 0, %s48
    %s49 = sphi 0, %s46
    %s50 = sphi 0, %s49
    %s66 = sphi 0, %s50
    %s72 = sphi 0, %s74
    %s75 = sphi 0, %s72
    %s76 = sphi 0, %s75
    %s92 = sphi 0, %s76
    %s96 = sphi 0, %s96
    %s98 = sphi 0, %s96
    %s99 = sphi 0, %s98
    %s113 = sphi 0, %s99
    %s117 = sphi 0, %s117
    %s119 = sphi 0, %s117
    %s120 = sphi 0, %s119
    %s134 = sphi 0, %s120
    %s138 = sphi 0, %s138
    %s140 = sphi 0, %s138
    %s141 = sphi 0, %s140
    %s155 = sphi 0, %s141
    %s159 = sphi 0, %s159
    %s161 = sphi 0, %s159
    %s162 = sphi 0, %s161
    %s176 = sphi 0, %s162
    %s180 = sphi 0, %s180
    %s182 = sphi 0, %s180
    %s183 = sphi 0, %s182
    %s197 = sphi 0, %s183
    %s201 = sphi 0, %s201
    %s203 = sphi 0, %s201
    %s204 = sphi 0, %s203
    %s218 = sphi 0, %s204
    %s222 = sphi 0, %s222
    %s224 = sphi 0, %s222
    %s225 = sphi 0, %s224
    %s239 = sphi 0, %s225
    %s243 = sphi 0, %s243
    %s245 = sphi 0, %s243
    %s246 = sphi 0, %s245
    %s260 = sphi 0, %s246
    %s264 = sphi 0, %s264
    %s266 = sphi 0, %s264
    %s267 = sphi 0, %s266
    %s281 = sphi 0, %s267
    %s285 = sphi 0, %s285
    %s287 = sphi 0, %s285
    %s288 = sphi 0, %s287
    %s302 = sphi 0, %s288
    %s306 = sphi 0, %s306
    %s308 = sphi 0, %s306
    %s309 = sphi 0, %s308
    %s323 = sphi 0, %s309
    %s327 = sphi 0, %s327
    %s329 = sphi 0, %s327
    %s330 = sphi 0, %s329
    %s344 = sphi 0, %s330
    %s348 = sphi 0, %s348
    %s350 = sphi 0, %s348
    %s351 = sphi 0, %s350
    %s365 = sphi 0, %s351
    %s369 = sphi 0, %s369
    %s371 = sphi 0, %s369
    %s372 = sphi 0, %s371
    %s386 = sphi 0, %s372
    %s394 = sphi 0, %s396
    %s397 = sphi 0, %s394
    %s398 = sphi 0, %s397
    %s414 = sphi 0, %s398
  $region4: #{tpu_custom_call.1} parent=0 // loop_header_branch
    %25 = sbr.rel (%p23) target = $region8
  $region5: #{tpu_custom_call.1} parent=0 // loop_body
    %s27 = ssub.s32 %s22, 1
    %s28 = ssub.s32 %s22, 2
    %s35 = sadd.s32 1, %s30
    %p36 = scmp.ge.s32.totalorder %s35, 1
    %s37 = scalar_select %p36, 0, %s35
    %s38 = sadd.s32 1, %s29
    %s39 = scalar_select %p36, %s38, %s29
    %p40 = scmp.ge.s32.totalorder %s39, 2
    %s41 = scalar_select %p40, 0, %s39
    %s42 = ssub.s32 %s29, %s41
    %s43 = ssub.s32 %s30, %s37
    %s44 = sor.u32 %s42, %s43
    %p45 = scmp.eq.s32.totalorder %s44, 0
    %s47 = sadd.s32 %s46, 1
    %s48 = scalar_select %p45, %s46, %s47
    %p51 = pneg %p45
    %p52 = scmp.eq.s32.totalorder %s22, 1
    %p53 = por %p51, %p52
    %p54 = scmp.ne.s32.totalorder %s46, %s49
    %p55 = scmp.eq.s32.totalorder %s22, 0
    %p56 = por %p54, %p55
    %p57 = scmp.ne.s32.totalorder %s46, %s49
    %p58 = scmp.eq.s32.totalorder %s27, 1
    %p59 = por %p57, %p58
    %p60 = scmp.ne.s32.totalorder %s49, %s50
    %p61 = scmp.eq.s32.totalorder %s27, 0
    %p62 = por %p60, %p61
    %p63 = scmp.ne.s32.totalorder %s49, %s50
    %p64 = scmp.eq.s32.totalorder %s28, 1
    %p65 = por %p63, %p64
    %p67 = scmp.ne.s32.totalorder %s50, %s66
    %p68 = scmp.eq.s32.totalorder %s28, 0
    %p69 = por %p67, %p68
    %s70 = ssub.s32 %s29, %s41
    %p71 = scmp.eq.s32.totalorder %s70, 0
    %s73 = sadd.s32 %s72, 1
    %s74 = scalar_select %p71, %s72, %s73
    %p77 = pneg %p71
    %p78 = scmp.eq.s32.totalorder %s22, 1
    %p79 = por %p77, %p78
    %p80 = scmp.ne.s32.totalorder %s72, %s75
    %p81 = scmp.eq.s32.totalorder %s22, 0
    %p82 = por %p80, %p81
    %p83 = scmp.ne.s32.totalorder %s72, %s75
    %p84 = scmp.eq.s32.totalorder %s27, 1
    %p85 = por %p83, %p84
    %p86 = scmp.ne.s32.totalorder %s75, %s76
    %p87 = scmp.eq.s32.totalorder %s27, 0
    %p88 = por %p86, %p87
    %p89 = scmp.ne.s32.totalorder %s75, %s76
    %p90 = scmp.eq.s32.totalorder %s28, 1
    %p91 = por %p89, %p90
    %p93 = scmp.ne.s32.totalorder %s76, %s92
    %p94 = scmp.eq.s32.totalorder %s28, 0
    %p95 = por %p93, %p94
    %s97 = sadd.s32 %s96, 1
    %p100 = scmp.eq.s32.totalorder %s22, 1
    %p101 = scmp.ne.s32.totalorder %s96, %s98
    %p102 = scmp.eq.s32.totalorder %s22, 0
    %p103 = por %p101, %p102
    %p104 = scmp.ne.s32.totalorder %s96, %s98
    %p105 = scmp.eq.s32.totalorder %s27, 1
    %p106 = por %p104, %p105
    %p107 = scmp.ne.s32.totalorder %s98, %s99
    %p108 = scmp.eq.s32.totalorder %s27, 0
    %p109 = por %p107, %p108
    %p110 = scmp.ne.s32.totalorder %s98, %s99
    %p111 = scmp.eq.s32.totalorder %s28, 1
    %p112 = por %p110, %p111
    %p114 = scmp.ne.s32.totalorder %s99, %s113
    %p115 = scmp.eq.s32.totalorder %s28, 0
    %p116 = por %p114, %p115
    %s118 = sadd.s32 %s117, 1
    %p121 = scmp.eq.s32.totalorder %s22, 1
    %p122 = scmp.ne.s32.totalorder %s117, %s119
    %p123 = scmp.eq.s32.totalorder %s22, 0
    %p124 = por %p122, %p123
    %p125 = scmp.ne.s32.totalorder %s117, %s119
    %p126 = scmp.eq.s32.totalorder %s27, 1
    %p127 = por %p125, %p126
    %p128 = scmp.ne.s32.totalorder %s119, %s120
    %p129 = scmp.eq.s32.totalorder %s27, 0
    %p130 = por %p128, %p129
    %p131 = scmp.ne.s32.totalorder %s119, %s120
    %p132 = scmp.eq.s32.totalorder %s28, 1
    %p133 = por %p131, %p132
    %p135 = scmp.ne.s32.totalorder %s120, %s134
    %p136 = scmp.eq.s32.totalorder %s28, 0
    %p137 = por %p135, %p136
    %s139 = sadd.s32 %s138, 1
    %p142 = scmp.eq.s32.totalorder %s22, 1
    %p143 = scmp.ne.s32.totalorder %s138, %s140
    %p144 = scmp.eq.s32.totalorder %s22, 0
    %p145 = por %p143, %p144
    %p146 = scmp.ne.s32.totalorder %s138, %s140
    %p147 = scmp.eq.s32.totalorder %s27, 1
    %p148 = por %p146, %p147
    %p149 = scmp.ne.s32.totalorder %s140, %s141
    %p150 = scmp.eq.s32.totalorder %s27, 0
    %p151 = por %p149, %p150
    %p152 = scmp.ne.s32.totalorder %s140, %s141
    %p153 = scmp.eq.s32.totalorder %s28, 1
    %p154 = por %p152, %p153
    %p156 = scmp.ne.s32.totalorder %s141, %s155
    %p157 = scmp.eq.s32.totalorder %s28, 0
    %p158 = por %p156, %p157
    %s160 = sadd.s32 %s159, 1
    %p163 = scmp.eq.s32.totalorder %s22, 1
    %p164 = scmp.ne.s32.totalorder %s159, %s161
    %p165 = scmp.eq.s32.totalorder %s22, 0
    %p166 = por %p164, %p165
    %p167 = scmp.ne.s32.totalorder %s159, %s161
    %p168 = scmp.eq.s32.totalorder %s27, 1
    %p169 = por %p167, %p168
    %p170 = scmp.ne.s32.totalorder %s161, %s162
    %p171 = scmp.eq.s32.totalorder %s27, 0
    %p172 = por %p170, %p171
    %p173 = scmp.ne.s32.totalorder %s161, %s162
    %p174 = scmp.eq.s32.totalorder %s28, 1
    %p175 = por %p173, %p174
    %p177 = scmp.ne.s32.totalorder %s162, %s176
    %p178 = scmp.eq.s32.totalorder %s28, 0
    %p179 = por %p177, %p178
    %s181 = sadd.s32 %s180, 1
    %p184 = scmp.eq.s32.totalorder %s22, 1
    %p185 = scmp.ne.s32.totalorder %s180, %s182
    %p186 = scmp.eq.s32.totalorder %s22, 0
    %p187 = por %p185, %p186
    %p188 = scmp.ne.s32.totalorder %s180, %s182
    %p189 = scmp.eq.s32.totalorder %s27, 1
    %p190 = por %p188, %p189
    %p191 = scmp.ne.s32.totalorder %s182, %s183
    %p192 = scmp.eq.s32.totalorder %s27, 0
    %p193 = por %p191, %p192
    %p194 = scmp.ne.s32.totalorder %s182, %s183
    %p195 = scmp.eq.s32.totalorder %s28, 1
    %p196 = por %p194, %p195
    %p198 = scmp.ne.s32.totalorder %s183, %s197
    %p199 = scmp.eq.s32.totalorder %s28, 0
    %p200 = por %p198, %p199
    %s202 = sadd.s32 %s201, 1
    %p205 = scmp.eq.s32.totalorder %s22, 1
    %p206 = scmp.ne.s32.totalorder %s201, %s203
    %p207 = scmp.eq.s32.totalorder %s22, 0
    %p208 = por %p206, %p207
    %p209 = scmp.ne.s32.totalorder %s201, %s203
    %p210 = scmp.eq.s32.totalorder %s27, 1
    %p211 = por %p209, %p210
    %p212 = scmp.ne.s32.totalorder %s203, %s204
    %p213 = scmp.eq.s32.totalorder %s27, 0
    %p214 = por %p212, %p213
    %p215 = scmp.ne.s32.totalorder %s203, %s204
    %p216 = scmp.eq.s32.totalorder %s28, 1
    %p217 = por %p215, %p216
    %p219 = scmp.ne.s32.totalorder %s204, %s218
    %p220 = scmp.eq.s32.totalorder %s28, 0
    %p221 = por %p219, %p220
    %s223 = sadd.s32 %s222, 1
    %p226 = scmp.eq.s32.totalorder %s22, 1
    %p227 = scmp.ne.s32.totalorder %s222, %s224
    %p228 = scmp.eq.s32.totalorder %s22, 0
    %p229 = por %p227, %p228
    %p230 = scmp.ne.s32.totalorder %s222, %s224
    %p231 = scmp.eq.s32.totalorder %s27, 1
    %p232 = por %p230, %p231
    %p233 = scmp.ne.s32.totalorder %s224, %s225
    %p234 = scmp.eq.s32.totalorder %s27, 0
    %p235 = por %p233, %p234
    %p236 = scmp.ne.s32.totalorder %s224, %s225
    %p237 = scmp.eq.s32.totalorder %s28, 1
    %p238 = por %p236, %p237
    %p240 = scmp.ne.s32.totalorder %s225, %s239
    %p241 = scmp.eq.s32.totalorder %s28, 0
    %p242 = por %p240, %p241
    %s244 = sadd.s32 %s243, 1
    %p247 = scmp.eq.s32.totalorder %s22, 1
    %p248 = scmp.ne.s32.totalorder %s243, %s245
    %p249 = scmp.eq.s32.totalorder %s22, 0
    %p250 = por %p248, %p249
    %p251 = scmp.ne.s32.totalorder %s243, %s245
    %p252 = scmp.eq.s32.totalorder %s27, 1
    %p253 = por %p251, %p252
    %p254 = scmp.ne.s32.totalorder %s245, %s246
    %p255 = scmp.eq.s32.totalorder %s27, 0
    %p256 = por %p254, %p255
    %p257 = scmp.ne.s32.totalorder %s245, %s246
    %p258 = scmp.eq.s32.totalorder %s28, 1
    %p259 = por %p257, %p258
    %p261 = scmp.ne.s32.totalorder %s246, %s260
    %p262 = scmp.eq.s32.totalorder %s28, 0
    %p263 = por %p261, %p262
    %s265 = sadd.s32 %s264, 1
    %p268 = scmp.eq.s32.totalorder %s22, 1
    %p269 = scmp.ne.s32.totalorder %s264, %s266
    %p270 = scmp.eq.s32.totalorder %s22, 0
    %p271 = por %p269, %p270
    %p272 = scmp.ne.s32.totalorder %s264, %s266
    %p273 = scmp.eq.s32.totalorder %s27, 1
    %p274 = por %p272, %p273
    %p275 = scmp.ne.s32.totalorder %s266, %s267
    %p276 = scmp.eq.s32.totalorder %s27, 0
    %p277 = por %p275, %p276
    %p278 = scmp.ne.s32.totalorder %s266, %s267
    %p279 = scmp.eq.s32.totalorder %s28, 1
    %p280 = por %p278, %p279
    %p282 = scmp.ne.s32.totalorder %s267, %s281
    %p283 = scmp.eq.s32.totalorder %s28, 0
    %p284 = por %p282, %p283
    %s286 = sadd.s32 %s285, 1
    %p289 = scmp.eq.s32.totalorder %s22, 1
    %p290 = scmp.ne.s32.totalorder %s285, %s287
    %p291 = scmp.eq.s32.totalorder %s22, 0
    %p292 = por %p290, %p291
    %p293 = scmp.ne.s32.totalorder %s285, %s287
    %p294 = scmp.eq.s32.totalorder %s27, 1
    %p295 = por %p293, %p294
    %p296 = scmp.ne.s32.totalorder %s287, %s288
    %p297 = scmp.eq.s32.totalorder %s27, 0
    %p298 = por %p296, %p297
    %p299 = scmp.ne.s32.totalorder %s287, %s288
    %p300 = scmp.eq.s32.totalorder %s28, 1
    %p301 = por %p299, %p300
    %p303 = scmp.ne.s32.totalorder %s288, %s302
    %p304 = scmp.eq.s32.totalorder %s28, 0
    %p305 = por %p303, %p304
    %s307 = sadd.s32 %s306, 1
    %p310 = scmp.eq.s32.totalorder %s22, 1
    %p311 = scmp.ne.s32.totalorder %s306, %s308
    %p312 = scmp.eq.s32.totalorder %s22, 0
    %p313 = por %p311, %p312
    %p314 = scmp.ne.s32.totalorder %s306, %s308
    %p315 = scmp.eq.s32.totalorder %s27, 1
    %p316 = por %p314, %p315
    %p317 = scmp.ne.s32.totalorder %s308, %s309
    %p318 = scmp.eq.s32.totalorder %s27, 0
    %p319 = por %p317, %p318
    %p320 = scmp.ne.s32.totalorder %s308, %s309
    %p321 = scmp.eq.s32.totalorder %s28, 1
    %p322 = por %p320, %p321
    %p324 = scmp.ne.s32.totalorder %s309, %s323
    %p325 = scmp.eq.s32.totalorder %s28, 0
    %p326 = por %p324, %p325
    %s328 = sadd.s32 %s327, 1
    %p331 = scmp.eq.s32.totalorder %s22, 1
    %p332 = scmp.ne.s32.totalorder %s327, %s329
    %p333 = scmp.eq.s32.totalorder %s22, 0
    %p334 = por %p332, %p333
    %p335 = scmp.ne.s32.totalorder %s327, %s329
    %p336 = scmp.eq.s32.totalorder %s27, 1
    %p337 = por %p335, %p336
    %p338 = scmp.ne.s32.totalorder %s329, %s330
    %p339 = scmp.eq.s32.totalorder %s27, 0
    %p340 = por %p338, %p339
    %p341 = scmp.ne.s32.totalorder %s329, %s330
    %p342 = scmp.eq.s32.totalorder %s28, 1
    %p343 = por %p341, %p342
    %p345 = scmp.ne.s32.totalorder %s330, %s344
    %p346 = scmp.eq.s32.totalorder %s28, 0
    %p347 = por %p345, %p346
    %s349 = sadd.s32 %s348, 1
    %p352 = scmp.eq.s32.totalorder %s22, 1
    %p353 = scmp.ne.s32.totalorder %s348, %s350
    %p354 = scmp.eq.s32.totalorder %s22, 0
    %p355 = por %p353, %p354
    %p356 = scmp.ne.s32.totalorder %s348, %s350
    %p357 = scmp.eq.s32.totalorder %s27, 1
    %p358 = por %p356, %p357
    %p359 = scmp.ne.s32.totalorder %s350, %s351
    %p360 = scmp.eq.s32.totalorder %s27, 0
    %p361 = por %p359, %p360
    %p362 = scmp.ne.s32.totalorder %s350, %s351
    %p363 = scmp.eq.s32.totalorder %s28, 1
    %p364 = por %p362, %p363
    %p366 = scmp.ne.s32.totalorder %s351, %s365
    %p367 = scmp.eq.s32.totalorder %s28, 0
    %p368 = por %p366, %p367
    %s370 = sadd.s32 %s369, 1
    %p373 = scmp.eq.s32.totalorder %s22, 1
    %p374 = scmp.ne.s32.totalorder %s369, %s371
    %p375 = scmp.eq.s32.totalorder %s22, 0
    %p376 = por %p374, %p375
    %p377 = scmp.ne.s32.totalorder %s369, %s371
    %p378 = scmp.eq.s32.totalorder %s27, 1
    %p379 = por %p377, %p378
    %p380 = scmp.ne.s32.totalorder %s371, %s372
    %p381 = scmp.eq.s32.totalorder %s27, 0
    %p382 = por %p380, %p381
    %p383 = scmp.ne.s32.totalorder %s371, %s372
    %p384 = scmp.eq.s32.totalorder %s28, 1
    %p385 = por %p383, %p384
    %p387 = scmp.ne.s32.totalorder %s372, %s386
    %p388 = scmp.eq.s32.totalorder %s28, 0
    %p389 = por %p387, %p388
    %s390 = ssub.s32 %s29, %s41
    %s391 = ssub.s32 %s30, %s37
    %s392 = sor.u32 %s390, %s391
    %p393 = scmp.eq.s32.totalorder %s392, 0
    %s395 = sadd.s32 %s394, 1
    %s396 = scalar_select %p393, %s394, %s395
    %p399 = pneg %p393
    %p400 = scmp.eq.s32.totalorder %s22, 1
    %p401 = por %p399, %p400
    %p402 = scmp.ne.s32.totalorder %s394, %s397
    %p403 = scmp.eq.s32.totalorder %s22, 0
    %p404 = por %p402, %p403
    %p405 = scmp.ne.s32.totalorder %s394, %s397
    %p406 = scmp.eq.s32.totalorder %s27, 1
    %p407 = por %p405, %p406
    %p408 = scmp.ne.s32.totalorder %s397, %s398
    %p409 = scmp.eq.s32.totalorder %s27, 0
    %p410 = por %p408, %p409
    %p411 = scmp.ne.s32.totalorder %s397, %s398
    %p412 = scmp.eq.s32.totalorder %s28, 1
    %p413 = por %p411, %p412
    %p415 = scmp.ne.s32.totalorder %s398, %s414
    %p416 = scmp.eq.s32.totalorder %s28, 0
    %p417 = por %p415, %p416
    %p418 = scmp.le.s32.totalorder 1, %s22
    %p419 = scmp.lt.s32.totalorder %s22, 3
    %p420 = pnand %p418, %p419
    %p421 = pneg %p420
    // Predicated region
    $region9: #{tpu_custom_call.1} parent=5 // pred_check
      _
    $region10: #{tpu_custom_call.1} parent=5 // pred_check_branch
      %423 = sbr.rel (%p420) target = $region12
    $region11: #{tpu_custom_call.1} parent=5 // pred_region
      %s424 = ssub.s32 %s22, 1
      // Predicated region
      $region13: #{tpu_custom_call.1} parent=11 // pred_check
        %p425 = pneg %p109
      $region14: #{tpu_custom_call.1} parent=11 // pred_check_branch
        %427 = sbr.rel (%p425) target = $region16
      $region15: #{tpu_custom_call.1} parent=11 // pred_region
        _
      $region16: #{tpu_custom_call.1} parent=11 // pred_fallthru
        _
      // Predicated region
      $region17: #{tpu_custom_call.1} parent=11 // pred_check
        %p428 = pneg %p130
      $region18: #{tpu_custom_call.1} parent=11 // pred_check_branch
        %430 = sbr.rel (%p428) target = $region20
      $region19: #{tpu_custom_call.1} parent=11 // pred_region
        _
      $region20: #{tpu_custom_call.1} parent=11 // pred_fallthru
        _
      // Predicated region
      $region21: #{tpu_custom_call.1} parent=11 // pred_check
        %p431 = pneg %p151
      $region22: #{tpu_custom_call.1} parent=11 // pred_check_branch
        %433 = sbr.rel (%p431) target = $region24
      $region23: #{tpu_custom_call.1} parent=11 // pred_region
        _
      $region24: #{tpu_custom_call.1} parent=11 // pred_fallthru
        _
      // Predicated region
      $region25: #{tpu_custom_call.1} parent=11 // pred_check
        %p434 = pneg %p172
      $region26: #{tpu_custom_call.1} parent=11 // pred_check_branch
        %436 = sbr.rel (%p434) target = $region28
      $region27: #{tpu_custom_call.1} parent=11 // pred_region
        _
      $region28: #{tpu_custom_call.1} parent=11 // pred_fallthru
        _
      // Predicated region
      $region29: #{tpu_custom_call.1} parent=11 // pred_check
        %p437 = pneg %p193
      $region30: #{tpu_custom_call.1} parent=11 // pred_check_branch
        %439 = sbr.rel (%p437) target = $region32
      $region31: #{tpu_custom_call.1} parent=11 // pred_region
        _
      $region32: #{tpu_custom_call.1} parent=11 // pred_fallthru
        _
      // Predicated region
      $region33: #{tpu_custom_call.1} parent=11 // pred_check
        %p440 = pneg %p214
      $region34: #{tpu_custom_call.1} parent=11 // pred_check_branch
        %442 = sbr.rel (%p440) target = $region36
      $region35: #{tpu_custom_call.1} parent=11 // pred_region
        _
      $region36: #{tpu_custom_call.1} parent=11 // pred_fallthru
        _
      // Predicated region
      $region37: #{tpu_custom_call.1} parent=11 // pred_check
        %p443 = pneg %p235
      $region38: #{tpu_custom_call.1} parent=11 // pred_check_branch
        %445 = sbr.rel (%p443) target = $region40
      $region39: #{tpu_custom_call.1} parent=11 // pred_region
        _
      $region40: #{tpu_custom_call.1} parent=11 // pred_fallthru
        _
      // Predicated region
      $region41: #{tpu_custom_call.1} parent=11 // pred_check
        %p446 = pneg %p256
      $region42: #{tpu_custom_call.1} parent=11 // pred_check_branch
        %448 = sbr.rel (%p446) target = $region44
      $region43: #{tpu_custom_call.1} parent=11 // pred_region
        _
      $region44: #{tpu_custom_call.1} parent=11 // pred_fallthru
        _
      // Predicated region
      $region45: #{tpu_custom_call.1} parent=11 // pred_check
        %p449 = pneg %p277
      $region46: #{tpu_custom_call.1} parent=11 // pred_check_branch
        %451 = sbr.rel (%p449) target = $region48
      $region47: #{tpu_custom_call.1} parent=11 // pred_region
        _
      $region48: #{tpu_custom_call.1} parent=11 // pred_fallthru
        _
      // Predicated region
      $region49: #{tpu_custom_call.1} parent=11 // pred_check
        %p452 = pneg %p298
      $region50: #{tpu_custom_call.1} parent=11 // pred_check_branch
        %454 = sbr.rel (%p452) target = $region52
      $region51: #{tpu_custom_call.1} parent=11 // pred_region
        _
      $region52: #{tpu_custom_call.1} parent=11 // pred_fallthru
        _
      // Predicated region
      $region53: #{tpu_custom_call.1} parent=11 // pred_check
        %p455 = pneg %p319
      $region54: #{tpu_custom_call.1} parent=11 // pred_check_branch
        %457 = sbr.rel (%p455) target = $region56
      $region55: #{tpu_custom_call.1} parent=11 // pred_region
        _
      $region56: #{tpu_custom_call.1} parent=11 // pred_fallthru
        _
      // Predicated region
      $region57: #{tpu_custom_call.1} parent=11 // pred_check
        %p458 = pneg %p340
      $region58: #{tpu_custom_call.1} parent=11 // pred_check_branch
        %460 = sbr.rel (%p458) target = $region60
      $region59: #{tpu_custom_call.1} parent=11 // pred_region
        _
      $region60: #{tpu_custom_call.1} parent=11 // pred_fallthru
        _
      // Predicated region
      $region61: #{tpu_custom_call.1} parent=11 // pred_check
        %p461 = pneg %p361
      $region62: #{tpu_custom_call.1} parent=11 // pred_check_branch
        %463 = sbr.rel (%p461) target = $region64
      $region63: #{tpu_custom_call.1} parent=11 // pred_region
        _
      $region64: #{tpu_custom_call.1} parent=11 // pred_fallthru
        _
      // Predicated region
      $region65: #{tpu_custom_call.1} parent=11 // pred_check
        %p464 = pneg %p382
      $region66: #{tpu_custom_call.1} parent=11 // pred_check_branch
        %466 = sbr.rel (%p464) target = $region68
      $region67: #{tpu_custom_call.1} parent=11 // pred_region
        _
      $region68: #{tpu_custom_call.1} parent=11 // pred_fallthru
        _
    $region12: #{tpu_custom_call.1} parent=5 // pred_fallthru
      _
    %p467 = scmp.lt.s32.totalorder %s22, 2
    // Predicated region
    $region69: #{tpu_custom_call.1} parent=5 // pred_check
      %p468 = pneg %p467
    $region70: #{tpu_custom_call.1} parent=5 // pred_check_branch
      %470 = sbr.rel (%p468) target = $region72
    $region71: #{tpu_custom_call.1} parent=5 // pred_region
      // Predicated region
      $region73: #{tpu_custom_call.1} parent=71 // pred_check
        %p471 = pneg %p56
      $region74: #{tpu_custom_call.1} parent=71 // pred_check_branch
        %473 = sbr.rel (%p471) target = $region76
      $region75: #{tpu_custom_call.1} parent=71 // pred_region
        %p474 = scmp.lt.s32.totalorder %s29, 1
        %s475 = scalar_select %p474, %s29, 1
        %p476 = scmp.lt.s32.totalorder %s30, 0
        %s477 = scalar_select %p476, %s30, 0
        %s478 = sadd.s32 %s477, %s475
        %s479 = smul.addr %s478, 8
        %s480 = scalar_lea.vmem %s0, %s479
      $region76: #{tpu_custom_call.1} parent=71 // pred_fallthru
        _
      // Predicated region
      $region77: #{tpu_custom_call.1} parent=71 // pred_check
        %p481 = pneg %p82
      $region78: #{tpu_custom_call.1} parent=71 // pred_check_branch
        %483 = sbr.rel (%p481) target = $region80
      $region79: #{tpu_custom_call.1} parent=71 // pred_region
        %p484 = scmp.lt.s32.totalorder %s29, 1
        %s485 = scalar_select %p484, %s29, 1
        %s486 = scalar_lea.vmem %s1, %s485
      $region80: #{tpu_custom_call.1} parent=71 // pred_fallthru
        _
    $region72: #{tpu_custom_call.1} parent=5 // pred_fallthru
      _
    %p487 = scmp.le.s32.totalorder 1, %s22
    %p488 = scmp.lt.s32.totalorder %s22, 3
    %p489 = pnand %p487, %p488
    %p490 = pneg %p489
    // Predicated region
    $region81: #{tpu_custom_call.1} parent=5 // pred_check
      _
    $region82: #{tpu_custom_call.1} parent=5 // pred_check_branch
      %492 = sbr.rel (%p489) target = $region84
    $region83: #{tpu_custom_call.1} parent=5 // pred_region
      %s493 = ssub.s32 %s22, 1
      %p494 = scmp.lt.s32.totalorder %s31, 1
      %s495 = scalar_select %p494, %s31, 1
      %p496 = scmp.lt.s32.totalorder %s32, 0
      %s497 = scalar_select %p496, %s32, 0
      %s498 = sadd.s32 %s497, %s495
      %s499 = smul.addr %s498, 8
      %s500 = scalar_lea.vmem %s0, %s499
      %p501 = pneg %p62
      %p502 = pneg %p59
      %p503 = scmp.lt.s32.totalorder %s31, 1
      %s504 = scalar_select %p503, %s31, 1
      %s505 = scalar_lea.vmem %s1, %s504
      %p506 = pneg %p88
      %p507 = pneg %p85
      %p508 = pneg %p109
      %p509 = pneg %p106
      %p510 = pneg %p130
      %p511 = pneg %p127
      %p512 = pneg %p151
      %p513 = pneg %p148
      %p514 = pneg %p172
      %p515 = pneg %p169
      %p516 = pneg %p193
      %p517 = pneg %p190
      %p518 = pneg %p214
      %p519 = pneg %p211
      %p520 = pneg %p235
      %p521 = pneg %p232
      %p522 = pneg %p256
      %p523 = pneg %p253
      %p524 = pneg %p277
      %p525 = pneg %p274
      %p526 = pneg %p298
      %p527 = pneg %p295
      %p528 = pneg %p319
      %p529 = pneg %p316
      %p530 = pneg %p340
      %p531 = pneg %p337
      %p532 = pneg %p361
      %p533 = pneg %p358
      %p534 = pneg %p382
      %p535 = pneg %p379
      %p536 = pneg %p410
      %p537 = pneg %p407
      %p538 = scmp.lt.s32.totalorder %s31, 1
      %s539 = scalar_select %p538, %s31, 1
      %p540 = scmp.lt.s32.totalorder %s32, 0
      %s541 = scalar_select %p540, %s32, 0
      %s542 = sadd.s32 %s541, %s539
      %s543 = smul.addr %s542, 8
      %s544 = scalar_lea.vmem %s16, %s543
      %p545 = scmp.lt.s32.totalorder %s31, 1
      %s546 = scalar_select %p545, %s31, 1
      %p547 = scmp.lt.s32.totalorder %s32, 0
      %s548 = scalar_select %p547, %s32, 0
      %s549 = sadd.s32 %s548, %s546
      %s550 = smul.addr %s549, 8
      %s551 = scalar_lea.vmem %s0, %s550
      %p552 = scmp.lt.s32.totalorder %s31, 1
      %s553 = scalar_select %p552, %s31, 1
      %s554 = scalar_lea.vmem %s1, %s553
      %p555 = scmp.lt.s32.totalorder %s31, 1
      %s556 = scalar_select %p555, %s31, 1
      %p557 = scmp.lt.s32.totalorder %s32, 0
      %s558 = scalar_select %p557, %s32, 0
      %s559 = sadd.s32 %s558, %s556
      %s560 = smul.addr %s559, 8
      %s561 = scalar_lea.vmem %s16, %s560
      %v562 = vld [vmem:[%s551] sm:$0xff]
      %v563 = vld [vmem:[%s554] sm:$0x1]
      %v564 = vld [vmem:[%s2] sm:$0x3]
      %v565 = vld [vmem:[%s3] sm:$0x3]
      %vm566 = vcmask 15360
      %v568 = vsel %vm566, %v563, 0
      %vm570 = vcmask 1041408
      %v572 = vsel %vm570, %v565, 0
      %574 = vmatprep.subr.mxu0 0.0
      %575 = vmatpush1.msra.mxu0 %v572
      %576 = vmatprep.subr.mxu0 0.0
      %577 = vmatpush1.msra.mxu0 0.0
      %578 = vmatprep.subr.mxu0 0.0
      %579 = vmatpush1.msra.mxu0 0.0
      %580 = vmatprep.subr.mxu0 0.0
      %581 = vmatpush1.msra.mxu0 0.0
      %582 = vmatprep.subr.mxu0 0.0
      %583 = vmatpush1.msra.mxu0 0.0
      %584 = vmatprep.subr.mxu0 0.0
      %585 = vmatpush1.msra.mxu0 0.0
      %586 = vmatprep.subr.mxu0 0.0
      %587 = vmatpush1.msra.mxu0 0.0
      %588 = vmatprep.subr.mxu0 0.0
      %589 = vmatpush1.msra.mxu0 0.0
      %590 = vmatprep.subr.mxu0 0.0
      %591 = vmatpush1.msra.mxu0 0.0
      %592 = vmatprep.subr.mxu0 0.0
      %593 = vmatpush1.msra.mxu0 0.0
      %594 = vmatprep.subr.mxu0 0.0
      %595 = vmatpush1.msra.mxu0 0.0
      %596 = vmatprep.subr.mxu0 0.0
      %597 = vmatpush1.msra.mxu0 0.0
      %598 = vmatprep.subr.mxu0 0.0
      %599 = vmatpush1.msra.mxu0 0.0
      %600 = vmatprep.subr.mxu0 0.0
      %601 = vmatpush1.msra.mxu0 0.0
      %602 = vmatprep.subr.mxu0 0.0
      %603 = vmatpush1.msra.mxu0 0.0
      %604 = vmatprep.subr.mxu0 0.0
      %605 = vmatpush1.msra.mxu0 0.0
      %606 = vmatprep.subr.mxu0 0.0
      %607 = vmatpush1.msra.mxu0 0.0
      %608 = vmatprep.subr.mxu0 0.0
      %609 = vmatpush1.msra.mxu0 0.0
      %610 = vmatprep.subr.mxu0 0.0
      %611 = vmatpush1.msra.mxu0 0.0
      %612 = vmatprep.subr.mxu0 0.0
      %613 = vmatpush1.msra.mxu0 0.0
      %614 = vmatprep.subr.mxu0 0.0
      %615 = vmatpush1.msra.mxu0 0.0
      %616 = vmatprep.subr.mxu0 0.0
      %617 = vmatpush1.msra.mxu0 0.0
      %618 = vmatprep.subr.mxu0 0.0
      %619 = vmatpush1.msra.mxu0 0.0
      %620 = vmatprep.subr.mxu0 0.0
      %621 = vmatpush1.msra.mxu0 0.0
      %622 = vmatprep.subr.mxu0 0.0
      %623 = vmatpush1.msra.mxu0 0.0
      %624 = vmatprep.subr.mxu0 0.0
      %625 = vmatpush1.msra.mxu0 0.0
      %626 = vmatprep.subr.mxu0 0.0
      %627 = vmatpush1.msra.mxu0 0.0
      %628 = vmatprep.subr.mxu0 0.0
      %629 = vmatpush1.msra.mxu0 0.0
      %630 = vmatprep.subr.mxu0 0.0
      %631 = vmatpush1.msra.mxu0 0.0
      %632 = vmatprep.subr.mxu0 0.0
      %633 = vmatpush1.msra.mxu0 0.0
      %634 = vmatprep.subr.mxu0 0.0
      %635 = vmatpush1.msra.mxu0 0.0
      %636 = vmatprep.subr.mxu0 0.0
      %637 = vmatpush1.msra.mxu0 0.0
      %638 = vmatprep.mubr.f32.mxu0 0.0
      %639 = vmatmul.mubr.f32.gmra.mrb[0].mxu0 %v568
      %v640 = vpop.f32.mrb[0].mxu0
      %v641 = vadd.f32 0.0, %v640
      %v642 = vpop.f32.mrb[0].mxu0
      %643 = vdwg.mxu0
      %v644 = vlaneseq
      %v645 = vshrl.u32 %v644, 7
      %v646 = vsub.s32 0, %v645
      %v647 = vrot.slane %v641, %v646
      %v649 = vsel %vm566, %v562, 0
      %v652 = vsel %vm570, %v564, 0
      %654 = vmatprep.subr.mxu0 0.0
      %655 = vmatpush1.msra.mxu0 %v652
      %656 = vmatprep.subr.mxu0 0.0
      %657 = vmatpush1.msra.mxu0 0.0
      %658 = vmatprep.subr.mxu0 0.0
      %659 = vmatpush1.msra.mxu0 0.0
      %660 = vmatprep.subr.mxu0 0.0
      %661 = vmatpush1.msra.mxu0 0.0
      %662 = vmatprep.subr.mxu0 0.0
      %663 = vmatpush1.msra.mxu0 0.0
      %664 = vmatprep.subr.mxu0 0.0
      %665 = vmatpush1.msra.mxu0 0.0
      %666 = vmatprep.subr.mxu0 0.0
      %667 = vmatpush1.msra.mxu0 0.0
      %668 = vmatprep.subr.mxu0 0.0
      %669 = vmatpush1.msra.mxu0 0.0
      %670 = vmatprep.subr.mxu0 0.0
      %671 = vmatpush1.msra.mxu0 0.0
      %672 = vmatprep.subr.mxu0 0.0
      %673 = vmatpush1.msra.mxu0 0.0
      %674 = vmatprep.subr.mxu0 0.0
      %675 = vmatpush1.msra.mxu0 0.0
      %676 = vmatprep.subr.mxu0 0.0
      %677 = vmatpush1.msra.mxu0 0.0
      %678 = vmatprep.subr.mxu0 0.0
      %679 = vmatpush1.msra.mxu0 0.0
      %680 = vmatprep.subr.mxu0 0.0
      %681 = vmatpush1.msra.mxu0 0.0
      %682 = vmatprep.subr.mxu0 0.0
      %683 = vmatpush1.msra.mxu0 0.0
      %684 = vmatprep.subr.mxu0 0.0
      %685 = vmatpush1.msra.mxu0 0.0
      %686 = vmatprep.subr.mxu0 0.0
      %687 = vmatpush1.msra.mxu0 0.0
      %688 = vmatprep.subr.mxu0 0.0
      %689 = vmatpush1.msra.mxu0 0.0
      %690 = vmatprep.subr.mxu0 0.0
      %691 = vmatpush1.msra.mxu0 0.0
      %692 = vmatprep.subr.mxu0 0.0
      %693 = vmatpush1.msra.mxu0 0.0
      %694 = vmatprep.subr.mxu0 0.0
      %695 = vmatpush1.msra.mxu0 0.0
      %696 = vmatprep.subr.mxu0 0.0
      %697 = vmatpush1.msra.mxu0 0.0
      %698 = vmatprep.subr.mxu0 0.0
      %699 = vmatpush1.msra.mxu0 0.0
      %700 = vmatprep.subr.mxu0 0.0
      %701 = vmatpush1.msra.mxu0 0.0
      %702 = vmatprep.subr.mxu0 0.0
      %703 = vmatpush1.msra.mxu0 0.0
      %704 = vmatprep.subr.mxu0 0.0
      %705 = vmatpush1.msra.mxu0 0.0
      %706 = vmatprep.subr.mxu0 0.0
      %707 = vmatpush1.msra.mxu0 0.0
      %708 = vmatprep.subr.mxu0 0.0
      %709 = vmatpush1.msra.mxu0 0.0
      %710 = vmatprep.subr.mxu0 0.0
      %711 = vmatpush1.msra.mxu0 0.0
      %712 = vmatprep.subr.mxu0 0.0
      %713 = vmatpush1.msra.mxu0 0.0
      %714 = vmatprep.subr.mxu0 0.0
      %715 = vmatpush1.msra.mxu0 0.0
      %716 = vmatprep.subr.mxu0 0.0
      %717 = vmatpush1.msra.mxu0 0.0
      %718 = vmatprep.mubr.f32.mxu0 0.0
      %719 = vmatmul.mubr.f32.gmra.mrb[0].mxu0 %v649
      %v720 = vpop.f32.mrb[0].mxu0
      %v721 = vadd.f32 %v647, %v720
      %v722 = vpop.f32.mrb[0].mxu0
      %723 = vdwg.mxu0
      %v724 = vld [vmem:[%s4] sm:$0x1]
      %v726 = vlaneseq
      %v727 = vshrl.u32 %v726, 7
      %v728 = vsub.s32 0, %v727
      %v729 = vrot.slane %v724, %v728
      %v731 = vadd.f32 %v721, %v729
      %v732 = vtanh.pop %v731
      %v733 = vld [vmem:[%s5] sm:$0xff]
      %v734 = vld [vmem:[%s5 + $0x8] sm:$0xff]
      %v735 = vld [vmem:[%s5 + $0x10] sm:$0xff]
      %v736 = vld [vmem:[%s5 + $0x18] sm:$0xff]
      %v737 = vld [vmem:[%s6] sm:$0x1]
      %v739 = vlaneseq
      %v740 = vshrl.u32 %v739, 7
      %v741 = vsub.s32 0, %v740
      %v742 = vrot.slane %v737, %v741
      %vm744 = vcmask 261120
      %v746 = vsel %vm744, %v732, 0
      %748 = vmatprep.subr.mxu0 0.0
      %749 = vmatpush1.msra.mxu0 %v733
      %750 = vmatprep.subr.mxu0 0.0
      %751 = vmatpush1.msra.mxu0 %v734
      %752 = vmatprep.subr.mxu0 0.0
      %753 = vmatpush1.msra.mxu0 %v735
      %754 = vmatprep.subr.mxu0 0.0
      %755 = vmatpush1.msra.mxu0 %v736
      %756 = vmatprep.subr.mxu0 0.0
      %757 = vmatpush1.msra.mxu0 0.0
      %758 = vmatprep.subr.mxu0 0.0
      %759 = vmatpush1.msra.mxu0 0.0
      %760 = vmatprep.subr.mxu0 0.0
      %761 = vmatpush1.msra.mxu0 0.0
      %762 = vmatprep.subr.mxu0 0.0
      %763 = vmatpush1.msra.mxu0 0.0
      %764 = vmatprep.subr.mxu0 0.0
      %765 = vmatpush1.msra.mxu0 0.0
      %766 = vmatprep.subr.mxu0 0.0
      %767 = vmatpush1.msra.mxu0 0.0
      %768 = vmatprep.subr.mxu0 0.0
      %769 = vmatpush1.msra.mxu0 0.0
      %770 = vmatprep.subr.mxu0 0.0
      %771 = vmatpush1.msra.mxu0 0.0
      %772 = vmatprep.subr.mxu0 0.0
      %773 = vmatpush1.msra.mxu0 0.0
      %774 = vmatprep.subr.mxu0 0.0
      %775 = vmatpush1.msra.mxu0 0.0
      %776 = vmatprep.subr.mxu0 0.0
      %777 = vmatpush1.msra.mxu0 0.0
      %778 = vmatprep.subr.mxu0 0.0
      %779 = vmatpush1.msra.mxu0 0.0
      %780 = vmatprep.subr.mxu0 0.0
      %781 = vmatpush1.msra.mxu0 0.0
      %782 = vmatprep.subr.mxu0 0.0
      %783 = vmatpush1.msra.mxu0 0.0
      %784 = vmatprep.subr.mxu0 0.0
      %785 = vmatpush1.msra.mxu0 0.0
      %786 = vmatprep.subr.mxu0 0.0
      %787 = vmatpush1.msra.mxu0 0.0
      %788 = vmatprep.subr.mxu0 0.0
      %789 = vmatpush1.msra.mxu0 0.0
      %790 = vmatprep.subr.mxu0 0.0
      %791 = vmatpush1.msra.mxu0 0.0
      %792 = vmatprep.subr.mxu0 0.0
      %793 = vmatpush1.msra.mxu0 0.0
      %794 = vmatprep.subr.mxu0 0.0
      %795 = vmatpush1.msra.mxu0 0.0
      %796 = vmatprep.subr.mxu0 0.0
      %797 = vmatpush1.msra.mxu0 0.0
      %798 = vmatprep.subr.mxu0 0.0
      %799 = vmatpush1.msra.mxu0 0.0
      %800 = vmatprep.subr.mxu0 0.0
      %801 = vmatpush1.msra.mxu0 0.0
      %802 = vmatprep.subr.mxu0 0.0
      %803 = vmatpush1.msra.mxu0 0.0
      %804 = vmatprep.subr.mxu0 0.0
      %805 = vmatpush1.msra.mxu0 0.0
      %806 = vmatprep.subr.mxu0 0.0
      %807 = vmatpush1.msra.mxu0 0.0
      %808 = vmatprep.subr.mxu0 0.0
      %809 = vmatpush1.msra.mxu0 0.0
      %810 = vmatprep.subr.mxu0 0.0
      %811 = vmatpush1.msra.mxu0 0.0
      %812 = vmatprep.mubr.f32.mxu0 0.0
      %813 = vmatmul.mubr.f32.gmra.mrb[0].mxu0 %v746
      %v814 = vpop.f32.mrb[0].mxu0
      %v815 = vadd.f32 %v742, %v814
      %v816 = vpop.f32.mrb[0].mxu0
      %817 = vdwg.mxu0
      %v818 = vtanh.pop %v815
      %v819 = vld [vmem:[%s7] sm:$0xff]
      %v820 = vld [vmem:[%s7 + $0x8] sm:$0xff]
      %v821 = vld [vmem:[%s7 + $0x10] sm:$0xff]
      %v822 = vld [vmem:[%s7 + $0x18] sm:$0xff]
      %v823 = vld [vmem:[%s8] sm:$0x1]
      %v825 = vlaneseq
      %v826 = vshrl.u32 %v825, 7
      %v827 = vsub.s32 0, %v826
      %v828 = vrot.slane %v823, %v827
      %v831 = vsel %vm744, %v818, 0
      %833 = vmatprep.subr.mxu0 0.0
      %834 = vmatpush1.msra.mxu0 %v819
      %835 = vmatprep.subr.mxu0 0.0
      %836 = vmatpush1.msra.mxu0 %v820
      %837 = vmatprep.subr.mxu0 0.0
      %838 = vmatpush1.msra.mxu0 %v821
      %839 = vmatprep.subr.mxu0 0.0
      %840 = vmatpush1.msra.mxu0 %v822
      %841 = vmatprep.subr.mxu0 0.0
      %842 = vmatpush1.msra.mxu0 0.0
      %843 = vmatprep.subr.mxu0 0.0
      %844 = vmatpush1.msra.mxu0 0.0
      %845 = vmatprep.subr.mxu0 0.0
      %846 = vmatpush1.msra.mxu0 0.0
      %847 = vmatprep.subr.mxu0 0.0
      %848 = vmatpush1.msra.mxu0 0.0
      %849 = vmatprep.subr.mxu0 0.0
      %850 = vmatpush1.msra.mxu0 0.0
      %851 = vmatprep.subr.mxu0 0.0
      %852 = vmatpush1.msra.mxu0 0.0
      %853 = vmatprep.subr.mxu0 0.0
      %854 = vmatpush1.msra.mxu0 0.0
      %855 = vmatprep.subr.mxu0 0.0
      %856 = vmatpush1.msra.mxu0 0.0
      %857 = vmatprep.subr.mxu0 0.0
      %858 = vmatpush1.msra.mxu0 0.0
      %859 = vmatprep.subr.mxu0 0.0
      %860 = vmatpush1.msra.mxu0 0.0
      %861 = vmatprep.subr.mxu0 0.0
      %862 = vmatpush1.msra.mxu0 0.0
      %863 = vmatprep.subr.mxu0 0.0
      %864 = vmatpush1.msra.mxu0 0.0
      %865 = vmatprep.subr.mxu0 0.0
      %866 = vmatpush1.msra.mxu0 0.0
      %867 = vmatprep.subr.mxu0 0.0
      %868 = vmatpush1.msra.mxu0 0.0
      %869 = vmatprep.subr.mxu0 0.0
      %870 = vmatpush1.msra.mxu0 0.0
      %871 = vmatprep.subr.mxu0 0.0
      %872 = vmatpush1.msra.mxu0 0.0
      %873 = vmatprep.subr.mxu0 0.0
      %874 = vmatpush1.msra.mxu0 0.0
      %875 = vmatprep.subr.mxu0 0.0
      %876 = vmatpush1.msra.mxu0 0.0
      %877 = vmatprep.subr.mxu0 0.0
      %878 = vmatpush1.msra.mxu0 0.0
      %879 = vmatprep.subr.mxu0 0.0
      %880 = vmatpush1.msra.mxu0 0.0
      %881 = vmatprep.subr.mxu0 0.0
      %882 = vmatpush1.msra.mxu0 0.0
      %883 = vmatprep.subr.mxu0 0.0
      %884 = vmatpush1.msra.mxu0 0.0
      %885 = vmatprep.subr.mxu0 0.0
      %886 = vmatpush1.msra.mxu0 0.0
      %887 = vmatprep.subr.mxu0 0.0
      %888 = vmatpush1.msra.mxu0 0.0
      %889 = vmatprep.subr.mxu0 0.0
      %890 = vmatpush1.msra.mxu0 0.0
      %891 = vmatprep.subr.mxu0 0.0
      %892 = vmatpush1.msra.mxu0 0.0
      %893 = vmatprep.subr.mxu0 0.0
      %894 = vmatpush1.msra.mxu0 0.0
      %895 = vmatprep.subr.mxu0 0.0
      %896 = vmatpush1.msra.mxu0 0.0
      %897 = vmatprep.mubr.f32.mxu0 0.0
      %898 = vmatmul.mubr.f32.gmra.mrb[0].mxu0 %v831
      %v899 = vpop.f32.mrb[0].mxu0
      %v900 = vadd.f32 %v828, %v899
      %v901 = vpop.f32.mrb[0].mxu0
      %902 = vdwg.mxu0
      %903 = vrot.lane.b32.xlu0 %v562, 126
      %v904 = vpop.permute.xlu0 %903
      %v906 = vadd.f32 %v900, %v904
      %v907 = vld [vmem:[%s9] sm:$0x3]
      %v908 = vld [vmem:[%s10] sm:$0x3]
      %v910 = vsel %vm570, %v908, 0
      %912 = vmatprep.subr.mxu0 0.0
      %913 = vmatpush1.msra.mxu0 %v910
      %914 = vmatprep.subr.mxu0 0.0
      %915 = vmatpush1.msra.mxu0 0.0
      %916 = vmatprep.subr.mxu0 0.0
      %917 = vmatpush1.msra.mxu0 0.0
      %918 = vmatprep.subr.mxu0 0.0
      %919 = vmatpush1.msra.mxu0 0.0
      %920 = vmatprep.subr.mxu0 0.0
      %921 = vmatpush1.msra.mxu0 0.0
      %922 = vmatprep.subr.mxu0 0.0
      %923 = vmatpush1.msra.mxu0 0.0
      %924 = vmatprep.subr.mxu0 0.0
      %925 = vmatpush1.msra.mxu0 0.0
      %926 = vmatprep.subr.mxu0 0.0
      %927 = vmatpush1.msra.mxu0 0.0
      %928 = vmatprep.subr.mxu0 0.0
      %929 = vmatpush1.msra.mxu0 0.0
      %930 = vmatprep.subr.mxu0 0.0
      %931 = vmatpush1.msra.mxu0 0.0
      %932 = vmatprep.subr.mxu0 0.0
      %933 = vmatpush1.msra.mxu0 0.0
      %934 = vmatprep.subr.mxu0 0.0
      %935 = vmatpush1.msra.mxu0 0.0
      %936 = vmatprep.subr.mxu0 0.0
      %937 = vmatpush1.msra.mxu0 0.0
      %938 = vmatprep.subr.mxu0 0.0
      %939 = vmatpush1.msra.mxu0 0.0
      %940 = vmatprep.subr.mxu0 0.0
      %941 = vmatpush1.msra.mxu0 0.0
      %942 = vmatprep.subr.mxu0 0.0
      %943 = vmatpush1.msra.mxu0 0.0
      %944 = vmatprep.subr.mxu0 0.0
      %945 = vmatpush1.msra.mxu0 0.0
      %946 = vmatprep.subr.mxu0 0.0
      %947 = vmatpush1.msra.mxu0 0.0
      %948 = vmatprep.subr.mxu0 0.0
      %949 = vmatpush1.msra.mxu0 0.0
      %950 = vmatprep.subr.mxu0 0.0
      %951 = vmatpush1.msra.mxu0 0.0
      %952 = vmatprep.subr.mxu0 0.0
      %953 = vmatpush1.msra.mxu0 0.0
      %954 = vmatprep.subr.mxu0 0.0
      %955 = vmatpush1.msra.mxu0 0.0
      %956 = vmatprep.subr.mxu0 0.0
      %957 = vmatpush1.msra.mxu0 0.0
      %958 = vmatprep.subr.mxu0 0.0
      %959 = vmatpush1.msra.mxu0 0.0
      %960 = vmatprep.subr.mxu0 0.0
      %961 = vmatpush1.msra.mxu0 0.0
      %962 = vmatprep.subr.mxu0 0.0
      %963 = vmatpush1.msra.mxu0 0.0
      %964 = vmatprep.subr.mxu0 0.0
      %965 = vmatpush1.msra.mxu0 0.0
      %966 = vmatprep.subr.mxu0 0.0
      %967 = vmatpush1.msra.mxu0 0.0
      %968 = vmatprep.subr.mxu0 0.0
      %969 = vmatpush1.msra.mxu0 0.0
      %970 = vmatprep.subr.mxu0 0.0
      %971 = vmatpush1.msra.mxu0 0.0
      %972 = vmatprep.subr.mxu0 0.0
      %973 = vmatpush1.msra.mxu0 0.0
      %974 = vmatprep.subr.mxu0 0.0
      %975 = vmatpush1.msra.mxu0 0.0
      %976 = vmatprep.mubr.f32.mxu0 0.0
      %977 = vmatmul.mubr.f32.gmra.mrb[0].mxu0 %v568
      %v978 = vpop.f32.mrb[0].mxu0
      %v979 = vadd.f32 0.0, %v978
      %v980 = vpop.f32.mrb[0].mxu0
      %981 = vdwg.mxu0
      %v982 = vlaneseq
      %v983 = vshrl.u32 %v982, 7
      %v984 = vsub.s32 0, %v983
      %v985 = vrot.slane %v979, %v984
      %v987 = vsel %vm566, %v906, 0
      %v990 = vsel %vm570, %v907, 0
      %992 = vmatprep.subr.mxu0 0.0
      %993 = vmatpush1.msra.mxu0 %v990
      %994 = vmatprep.subr.mxu0 0.0
      %995 = vmatpush1.msra.mxu0 0.0
      %996 = vmatprep.subr.mxu0 0.0
      %997 = vmatpush1.msra.mxu0 0.0
      %998 = vmatprep.subr.mxu0 0.0
      %999 = vmatpush1.msra.mxu0 0.0
      %1000 = vmatprep.subr.mxu0 0.0
      %1001 = vmatpush1.msra.mxu0 0.0
      %1002 = vmatprep.subr.mxu0 0.0
      %1003 = vmatpush1.msra.mxu0 0.0
      %1004 = vmatprep.subr.mxu0 0.0
      %1005 = vmatpush1.msra.mxu0 0.0
      %1006 = vmatprep.subr.mxu0 0.0
      %1007 = vmatpush1.msra.mxu0 0.0
      %1008 = vmatprep.subr.mxu0 0.0
      %1009 = vmatpush1.msra.mxu0 0.0
      %1010 = vmatprep.subr.mxu0 0.0
      %1011 = vmatpush1.msra.mxu0 0.0
      %1012 = vmatprep.subr.mxu0 0.0
      %1013 = vmatpush1.msra.mxu0 0.0
      %1014 = vmatprep.subr.mxu0 0.0
      %1015 = vmatpush1.msra.mxu0 0.0
      %1016 = vmatprep.subr.mxu0 0.0
      %1017 = vmatpush1.msra.mxu0 0.0
      %1018 = vmatprep.subr.mxu0 0.0
      %1019 = vmatpush1.msra.mxu0 0.0
      %1020 = vmatprep.subr.mxu0 0.0
      %1021 = vmatpush1.msra.mxu0 0.0
      %1022 = vmatprep.subr.mxu0 0.0
      %1023 = vmatpush1.msra.mxu0 0.0
      %1024 = vmatprep.subr.mxu0 0.0
      %1025 = vmatpush1.msra.mxu0 0.0
      %1026 = vmatprep.subr.mxu0 0.0
      %1027 = vmatpush1.msra.mxu0 0.0
      %1028 = vmatprep.subr.mxu0 0.0
      %1029 = vmatpush1.msra.mxu0 0.0
      %1030 = vmatprep.subr.mxu0 0.0
      %1031 = vmatpush1.msra.mxu0 0.0
      %1032 = vmatprep.subr.mxu0 0.0
      %1033 = vmatpush1.msra.mxu0 0.0
      %1034 = vmatprep.subr.mxu0 0.0
      %1035 = vmatpush1.msra.mxu0 0.0
      %1036 = vmatprep.subr.mxu0 0.0
      %1037 = vmatpush1.msra.mxu0 0.0
      %1038 = vmatprep.subr.mxu0 0.0
      %1039 = vmatpush1.msra.mxu0 0.0
      %1040 = vmatprep.subr.mxu0 0.0
      %1041 = vmatpush1.msra.mxu0 0.0
      %1042 = vmatprep.subr.mxu0 0.0
      %1043 = vmatpush1.msra.mxu0 0.0
      %1044 = vmatprep.subr.mxu0 0.0
      %1045 = vmatpush1.msra.mxu0 0.0
      %1046 = vmatprep.subr.mxu0 0.0
      %1047 = vmatpush1.msra.mxu0 0.0
      %1048 = vmatprep.subr.mxu0 0.0
      %1049 = vmatpush1.msra.mxu0 0.0
      %1050 = vmatprep.subr.mxu0 0.0
      %1051 = vmatpush1.msra.mxu0 0.0
      %1052 = vmatprep.subr.mxu0 0.0
      %1053 = vmatpush1.msra.mxu0 0.0
      %1054 = vmatprep.subr.mxu0 0.0
      %1055 = vmatpush1.msra.mxu0 0.0
      %1056 = vmatprep.mubr.f32.mxu0 0.0
      %1057 = vmatmul.mubr.f32.gmra.mrb[0].mxu0 %v987
      %v1058 = vpop.f32.mrb[0].mxu0
      %v1059 = vadd.f32 %v985, %v1058
      %v1060 = vpop.f32.mrb[0].mxu0
      %1061 = vdwg.mxu0
      %v1062 = vld [vmem:[%s11] sm:$0x1]
      %v1064 = vlaneseq
      %v1065 = vshrl.u32 %v1064, 7
      %v1066 = vsub.s32 0, %v1065
      %v1067 = vrot.slane %v1062, %v1066
      %v1069 = vadd.f32 %v1059, %v1067
      %v1070 = vtanh.pop %v1069
      %v1071 = vld [vmem:[%s12] sm:$0xff]
      %v1072 = vld [vmem:[%s12 + $0x8] sm:$0xff]
      %v1073 = vld [vmem:[%s12 + $0x10] sm:$0xff]
      %v1074 = vld [vmem:[%s12 + $0x18] sm:$0xff]
      %v1075 = vld [vmem:[%s13] sm:$0x1]
      %v1077 = vlaneseq
      %v1078 = vshrl.u32 %v1077, 7
      %v1079 = vsub.s32 0, %v1078
      %v1080 = vrot.slane %v1075, %v1079
      %v1083 = vsel %vm744, %v1070, 0
      %1085 = vmatprep.subr.mxu0 0.0
      %1086 = vmatpush1.msra.mxu0 %v1071
      %1087 = vmatprep.subr.mxu0 0.0
      %1088 = vmatpush1.msra.mxu0 %v1072
      %1089 = vmatprep.subr.mxu0 0.0
      %1090 = vmatpush1.msra.mxu0 %v1073
      %1091 = vmatprep.subr.mxu0 0.0
      %1092 = vmatpush1.msra.mxu0 %v1074
      %1093 = vmatprep.subr.mxu0 0.0
      %1094 = vmatpush1.msra.mxu0 0.0
      %1095 = vmatprep.subr.mxu0 0.0
      %1096 = vmatpush1.msra.mxu0 0.0
      %1097 = vmatprep.subr.mxu0 0.0
      %1098 = vmatpush1.msra.mxu0 0.0
      %1099 = vmatprep.subr.mxu0 0.0
      %1100 = vmatpush1.msra.mxu0 0.0
      %1101 = vmatprep.subr.mxu0 0.0
      %1102 = vmatpush1.msra.mxu0 0.0
      %1103 = vmatprep.subr.mxu0 0.0
      %1104 = vmatpush1.msra.mxu0 0.0
      %1105 = vmatprep.subr.mxu0 0.0
      %1106 = vmatpush1.msra.mxu0 0.0
      %1107 = vmatprep.subr.mxu0 0.0
      %1108 = vmatpush1.msra.mxu0 0.0
      %1109 = vmatprep.subr.mxu0 0.0
      %1110 = vmatpush1.msra.mxu0 0.0
      %1111 = vmatprep.subr.mxu0 0.0
      %1112 = vmatpush1.msra.mxu0 0.0
      %1113 = vmatprep.subr.mxu0 0.0
      %1114 = vmatpush1.msra.mxu0 0.0
      %1115 = vmatprep.subr.mxu0 0.0
      %1116 = vmatpush1.msra.mxu0 0.0
      %1117 = vmatprep.subr.mxu0 0.0
      %1118 = vmatpush1.msra.mxu0 0.0
      %1119 = vmatprep.subr.mxu0 0.0
      %1120 = vmatpush1.msra.mxu0 0.0
      %1121 = vmatprep.subr.mxu0 0.0
      %1122 = vmatpush1.msra.mxu0 0.0
      %1123 = vmatprep.subr.mxu0 0.0
      %1124 = vmatpush1.msra.mxu0 0.0
      %1125 = vmatprep.subr.mxu0 0.0
      %1126 = vmatpush1.msra.mxu0 0.0
      %1127 = vmatprep.subr.mxu0 0.0
      %1128 = vmatpush1.msra.mxu0 0.0
      %1129 = vmatprep.subr.mxu0 0.0
      %1130 = vmatpush1.msra.mxu0 0.0
      %1131 = vmatprep.subr.mxu0 0.0
      %1132 = vmatpush1.msra.mxu0 0.0
      %1133 = vmatprep.subr.mxu0 0.0
      %1134 = vmatpush1.msra.mxu0 0.0
      %1135 = vmatprep.subr.mxu0 0.0
      %1136 = vmatpush1.msra.mxu0 0.0
      %1137 = vmatprep.subr.mxu0 0.0
      %1138 = vmatpush1.msra.mxu0 0.0
      %1139 = vmatprep.subr.mxu0 0.0
      %1140 = vmatpush1.msra.mxu0 0.0
      %1141 = vmatprep.subr.mxu0 0.0
      %1142 = vmatpush1.msra.mxu0 0.0
      %1143 = vmatprep.subr.mxu0 0.0
      %1144 = vmatpush1.msra.mxu0 0.0
      %1145 = vmatprep.subr.mxu0 0.0
      %1146 = vmatpush1.msra.mxu0 0.0
      %1147 = vmatprep.subr.mxu0 0.0
      %1148 = vmatpush1.msra.mxu0 0.0
      %1149 = vmatprep.mubr.f32.mxu0 0.0
      %1150 = vmatmul.mubr.f32.gmra.mrb[0].mxu0 %v1083
      %v1151 = vpop.f32.mrb[0].mxu0
      %v1152 = vadd.f32 %v1080, %v1151
      %v1153 = vpop.f32.mrb[0].mxu0
      %1154 = vdwg.mxu0
      %v1155 = vtanh.pop %v1152
      %v1156 = vld [vmem:[%s14] sm:$0xff]
      %v1157 = vld [vmem:[%s14 + $0x8] sm:$0xff]
      %v1158 = vld [vmem:[%s14 + $0x10] sm:$0xff]
      %v1159 = vld [vmem:[%s14 + $0x18] sm:$0xff]
      %v1160 = vld [vmem:[%s15] sm:$0x1]
      %v1162 = vlaneseq
      %v1163 = vshrl.u32 %v1162, 7
      %v1164 = vsub.s32 0, %v1163
      %v1165 = vrot.slane %v1160, %v1164
      %v1168 = vsel %vm744, %v1155, 0
      %1170 = vmatprep.subr.mxu0 0.0
      %1171 = vmatpush1.msra.mxu0 %v1156
      %1172 = vmatprep.subr.mxu0 0.0
      %1173 = vmatpush1.msra.mxu0 %v1157
      %1174 = vmatprep.subr.mxu0 0.0
      %1175 = vmatpush1.msra.mxu0 %v1158
      %1176 = vmatprep.subr.mxu0 0.0
      %1177 = vmatpush1.msra.mxu0 %v1159
      %1178 = vmatprep.subr.mxu0 0.0
      %1179 = vmatpush1.msra.mxu0 0.0
      %1180 = vmatprep.subr.mxu0 0.0
      %1181 = vmatpush1.msra.mxu0 0.0
      %1182 = vmatprep.subr.mxu0 0.0
      %1183 = vmatpush1.msra.mxu0 0.0
      %1184 = vmatprep.subr.mxu0 0.0
      %1185 = vmatpush1.msra.mxu0 0.0
      %1186 = vmatprep.subr.mxu0 0.0
      %1187 = vmatpush1.msra.mxu0 0.0
      %1188 = vmatprep.subr.mxu0 0.0
      %1189 = vmatpush1.msra.mxu0 0.0
      %1190 = vmatprep.subr.mxu0 0.0
      %1191 = vmatpush1.msra.mxu0 0.0
      %1192 = vmatprep.subr.mxu0 0.0
      %1193 = vmatpush1.msra.mxu0 0.0
      %1194 = vmatprep.subr.mxu0 0.0
      %1195 = vmatpush1.msra.mxu0 0.0
      %1196 = vmatprep.subr.mxu0 0.0
      %1197 = vmatpush1.msra.mxu0 0.0
      %1198 = vmatprep.subr.mxu0 0.0
      %1199 = vmatpush1.msra.mxu0 0.0
      %1200 = vmatprep.subr.mxu0 0.0
      %1201 = vmatpush1.msra.mxu0 0.0
      %1202 = vmatprep.subr.mxu0 0.0
      %1203 = vmatpush1.msra.mxu0 0.0
      %1204 = vmatprep.subr.mxu0 0.0
      %1205 = vmatpush1.msra.mxu0 0.0
      %1206 = vmatprep.subr.mxu0 0.0
      %1207 = vmatpush1.msra.mxu0 0.0
      %1208 = vmatprep.subr.mxu0 0.0
      %1209 = vmatpush1.msra.mxu0 0.0
      %1210 = vmatprep.subr.mxu0 0.0
      %1211 = vmatpush1.msra.mxu0 0.0
      %1212 = vmatprep.subr.mxu0 0.0
      %1213 = vmatpush1.msra.mxu0 0.0
      %1214 = vmatprep.subr.mxu0 0.0
      %1215 = vmatpush1.msra.mxu0 0.0
      %1216 = vmatprep.subr.mxu0 0.0
      %1217 = vmatpush1.msra.mxu0 0.0
      %1218 = vmatprep.subr.mxu0 0.0
      %1219 = vmatpush1.msra.mxu0 0.0
      %1220 = vmatprep.subr.mxu0 0.0
      %1221 = vmatpush1.msra.mxu0 0.0
      %1222 = vmatprep.subr.mxu0 0.0
      %1223 = vmatpush1.msra.mxu0 0.0
      %1224 = vmatprep.subr.mxu0 0.0
      %1225 = vmatpush1.msra.mxu0 0.0
      %1226 = vmatprep.subr.mxu0 0.0
      %1227 = vmatpush1.msra.mxu0 0.0
      %1228 = vmatprep.subr.mxu0 0.0
      %1229 = vmatpush1.msra.mxu0 0.0
      %1230 = vmatprep.subr.mxu0 0.0
      %1231 = vmatpush1.msra.mxu0 0.0
      %1232 = vmatprep.subr.mxu0 0.0
      %1233 = vmatpush1.msra.mxu0 0.0
      %1234 = vmatprep.mubr.f32.mxu0 0.0
      %1235 = vmatmul.mubr.f32.gmra.mrb[0].mxu0 %v1168
      %v1236 = vpop.f32.mrb[0].mxu0
      %v1237 = vadd.f32 %v1165, %v1236
      %v1238 = vpop.f32.mrb[0].mxu0
      %1239 = vdwg.mxu0
      %v1240 = vadd.f32 %v1237, %v562
      %1241 = vst.msk [vmem:[%s561] sm:$0xff] %vm566, %v1240
      %1242 = vrot.lane.b32.xlu0 %v906, 2
      %v1243 = vpop.permute.xlu0 %1242
      %vm1245 = vcmask 31760
      %1246 = vst.msk [vmem:[%s561] sm:$0xff] %vm1245, %v1243
      %p1247 = scmp.lt.s32.totalorder %s31, 1
      %s1248 = scalar_select %p1247, %s31, 1
      %p1249 = scmp.lt.s32.totalorder %s32, 0
      %s1250 = scalar_select %p1249, %s32, 0
      %s1251 = sadd.s32 %s1250, %s1248
      %s1252 = smul.addr %s1251, 8
      %s1253 = scalar_lea.vmem %s16, %s1252
      // Predicated region
      $region85: #{tpu_custom_call.1} parent=83 // pred_check
        %p1254 = pneg %p407
      $region86: #{tpu_custom_call.1} parent=83 // pred_check_branch
        %1256 = sbr.rel (%p1254) target = $region88
      $region87: #{tpu_custom_call.1} parent=83 // pred_region
        _
      $region88: #{tpu_custom_call.1} parent=83 // pred_fallthru
        _
    $region84: #{tpu_custom_call.1} parent=5 // pred_fallthru
      _
    %p1257 = scmp.le.s32.totalorder 2, %s22
    // Predicated region
    $region89: #{tpu_custom_call.1} parent=5 // pred_check
      %p1258 = pneg %p1257
    $region90: #{tpu_custom_call.1} parent=5 // pred_check_branch
      %1260 = sbr.rel (%p1258) target = $region92
    $region91: #{tpu_custom_call.1} parent=5 // pred_region
      %s1261 = ssub.s32 %s22, 2
      // Predicated region
      $region93: #{tpu_custom_call.1} parent=91 // pred_check
        %p1262 = pneg %p413
      $region94: #{tpu_custom_call.1} parent=91 // pred_check_branch
        %1264 = sbr.rel (%p1262) target = $region96
      $region95: #{tpu_custom_call.1} parent=91 // pred_region
        %p1265 = scmp.lt.s32.totalorder %s33, 1
        %s1266 = scalar_select %p1265, %s33, 1
        %p1267 = scmp.lt.s32.totalorder %s34, 0
        %s1268 = scalar_select %p1267, %s34, 0
        %s1269 = sadd.s32 %s1268, %s1266
        %s1270 = smul.addr %s1269, 8
        %s1271 = scalar_lea.vmem %s16, %s1270
      $region96: #{tpu_custom_call.1} parent=91 // pred_fallthru
        _
    $region92: #{tpu_custom_call.1} parent=5 // pred_fallthru
      _
  $region6: #{tpu_custom_call.1} parent=0 // loop_footer
    %s26 = sadd.s32 1, %s22
  $region7: #{tpu_custom_call.1} parent=0 // loop_footer_branch
    %21 = sbr.rel target = $region3
  $region8: #{tpu_custom_call.1} parent=0 // loop_exit
    _

</llo_original>
